<compile_context>
chip_gen: v5e
topology: v5e:2x2
jax: 0.10.0
libtpu: 0.0.40
codegen_flags: <defaults>
</compile_context>

<pallas_src>
import functools

import jax
import jax.numpy as jnp
from jax import lax
from jax.experimental import pallas as pl
from jax.experimental.pallas import tpu as pltpu


# ---------------------------------------------------------------------------
# Fused kernel: dense top-K blend (VPU) + 1-D grid_sample (MXU)
# one grid step == (batch element b, query-point tile n)
# ---------------------------------------------------------------------------
def _fused_kernel(l_sizes, qp_ref, w_ref, lines_ref, out_ref, bl_ref):
    """
    l_sizes   (Lx, Ly, Lz)          static Python ints (closure)
    qp_ref    (tn, 3)               normalized query coords in [-1, 1]
    w_ref     (P, J*C)              dense top-K blend weights for this b,
                                    pre-broadcast over the channel axis
    lines_ref (P, Lx+Ly+Lz, J*C)    feature lines, row = axis-offset + l   (DMA'd once)
    out_ref   (tn, 3*J*C)           output columns ordered (axis, joint, channel)
    bl_ref    (Lx+Ly+Lz, J*C)       VMEM scratch: per-axis blended feature-line tables,
                                    persists across the N-tile grid axis
    """
    P, Ltot, JC = lines_ref.shape
    tn = qp_ref.shape[0]

    # ---- stage 1: dense top-K blend, once per batch element ------------------
    # Lane-dense elementwise FMA over all P pose points (non-top-K weights are 0).
    @pl.when(pl.program_id(1) == 0)
    def _():
        acc = w_ref[0:1, :] * lines_ref[0]                      # (Ltot, JC)
        for p in range(1, P):                                   # P small & static
            acc = acc + w_ref[p:p + 1, :] * lines_ref[p]
        bl_ref[...] = acc

    # ---- stage 2: 1-D grid_sample (bilinear, align_corners=True) -------------
    # One lane-dense (tn, La) x (La, J*C) MXU matmul per axis.
    qp = qp_ref[...]                                            # (tn, 3)
    off = 0
    for a, La in enumerate(l_sizes):
        t = qp[:, a:a + 1]                                      # (tn, 1) in [-1, 1]
        pos = jnp.clip((t + 1.0) * 0.5 * (La - 1), 0.0, float(La - 1))
        i0 = jnp.floor(pos).astype(jnp.int32)
        i1 = jnp.minimum(i0 + 1, La - 1)
        frac = pos - i0.astype(jnp.float32)
        iota_l = lax.broadcasted_iota(jnp.int32, (tn, La), 1)
        interp = (jnp.where(iota_l == i0, 1.0 - frac, 0.0)
                  + jnp.where(iota_l == i1, frac, 0.0))         # (tn, La)
        table = bl_ref[pl.ds(off, La), :]                       # (La, JC)
        out_ref[:, pl.ds(a * JC, JC)] = jnp.dot(
            interp, table, preferred_element_type=jnp.float32)  # (tn, JC)
        off += La


def _pick_tile(n, cap=512):
    """Largest N-tile <= cap that divides N and keeps the (8,128) layout rule."""
    if n <= cap:
        return n
    for t in range(cap, 7, -1):
        if n % t == 0 and t % 8 == 0:
            return t
    return n


# ---------------------------------------------------------------------------
# Forward wrapper: normalization, top-K (plain JAX), single fused pallas_call
# ---------------------------------------------------------------------------
def pose_vocab_forward(query_points, query_poses, params):
    bounds = params["spacial_bounds"]                           # (2, 3)
    qp = (query_points - bounds[0][None, None]) / (bounds[1] - bounds[0])[None, None]
    qp = 2.0 * qp - 1.0                                         # (B, N, 3)

    pose_points = params["pose_points"]                         # (J, P, 4)
    knn = params["knn"]
    J, P, _ = pose_points.shape
    assert knn <= P, "knn must not exceed the number of pose points"

    # Top-K + L1 normalize + scatter into a dense (B, J, P) weight matrix in plain
    # JAX (the data is ~KBs; a dedicated pallas_call costs more than it saves),
    # then pre-broadcast per-joint weights over the channel axis -> (B, P, J*C).
    dist = jnp.abs(jnp.einsum('bjd,jpd->bjp', query_poses, pose_points))
    w, ids = jax.lax.top_k(dist, knn)                           # (B, J, K)
    w = w / jnp.maximum(jnp.sum(w, axis=-1, keepdims=True), 1e-16)
    wd = jnp.sum(jax.nn.one_hot(ids, P, dtype=w.dtype) * w[..., None], axis=2)

    lines_x = params["feat_lines_x"]                            # (J, P, Lx, C)
    lines_y = params["feat_lines_y"]                            # (J, P, Ly, C)
    lines_z = params["feat_lines_z"]                            # (J, P, Lz, C)
    Lx, Ly, Lz = lines_x.shape[2], lines_y.shape[2], lines_z.shape[2]
    C = lines_x.shape[3]
    JC = J * C

    w_exp = jnp.repeat(jnp.swapaxes(wd, 1, 2), C, axis=-1)      # (B, P, J*C)

    # One-time parameter re-layout: (J, P, La, C) -> (P, La, J*C), concat over La.
    def _re(lines):
        _, P_, La, C_ = lines.shape
        return jnp.transpose(lines, (1, 2, 0, 3)).reshape(P_, La, J * C_)

    lines_cat = jnp.concatenate([_re(lines_x), _re(lines_y), _re(lines_z)],
                                axis=1)                         # (P, Lx+Ly+Lz, J*C)
    Ltot = Lx + Ly + Lz
    # TODO(synk): for memory-bound production sizes store lines_cat as bfloat16
    # (halves the one-time HBM read); the kernel blends/accumulates in f32.

    B, N, _ = qp.shape
    tn = _pick_tile(N)
    grid = (B, N // tn)

    kernel = functools.partial(_fused_kernel, (Lx, Ly, Lz))
    out = pl.pallas_call(
        kernel,
        grid=grid,
        in_specs=[
            pl.BlockSpec((None, tn, 3), lambda b, n: (b, n, 0)),
            pl.BlockSpec((None, P, JC), lambda b, n: (b, 0, 0)),
            pl.BlockSpec((P, Ltot, JC), lambda b, n: (0, 0, 0)),   # fetched once
        ],
        out_specs=pl.BlockSpec((None, tn, 3 * JC), lambda b, n: (b, n, 0)),
        out_shape=jax.ShapeDtypeStruct((B, N, 3 * JC), jnp.float32),
        scratch_shapes=[pltpu.VMEM((Ltot, JC), jnp.float32)],
        compiler_params=pltpu.CompilerParams(
            dimension_semantics=("parallel", "arbitrary")),
    )(qp, w_exp, lines_cat)

    # (B, N, 3, J, C) -> (B, N, J, 3, C): single cheap layout fix (C stays minor).
    # TODO(synk): training-mode TV smooth_loss is not implemented (eval path returns None).
    # TODO(synk): the repo's custom grid_sample is assumed bilinear/align_corners=True.
    return jnp.transpose(out.reshape(B, N, 3, J, C), (0, 1, 3, 2, 4))


# ---------------------------------------------------------------------------
# Pure-JAX reference (same math) for verification
# ---------------------------------------------------------------------------
def reference_forward(query_points, query_poses, params):
    bounds = params["spacial_bounds"]
    qp = 2.0 * (query_points - bounds[0]) / (bounds[1] - bounds[0]) - 1.0
    dist = jnp.abs(jnp.einsum('bjd,jpd->bjp', query_poses, params["pose_points"]))
    w, ids = jax.lax.top_k(dist, params["knn"])
    w = w / jnp.maximum(jnp.sum(w, axis=-1, keepdims=True), 1e-16)
    B, N, _ = query_points.shape
    J = query_poses.shape[1]
    feats = []
    for a, lines in enumerate([params["feat_lines_x"],
                               params["feat_lines_y"],
                               params["feat_lines_z"]]):
        L = lines.shape[2]
        g = lines[jnp.arange(J)[None, :, None], ids]             # (B, J, K, L, C)
        blended = jnp.einsum('bjk,bjklc->bjlc', w, g)            # (B, J, L, C)
        pos = jnp.clip((qp[..., a] + 1.0) * 0.5 * (L - 1), 0.0, L - 1)
        i0 = jnp.floor(pos).astype(jnp.int32)
        i1 = jnp.minimum(i0 + 1, L - 1)
        frac = (pos - i0)[..., None, None]                       # (B, N, 1, 1)
        bi = jnp.arange(B)[:, None, None]
        ji = jnp.arange(J)[None, None, :]
        g0 = blended[bi, ji, i0[:, :, None]]                     # (B, N, J, C)
        g1 = blended[bi, ji, i1[:, :, None]]
        feats.append((1.0 - frac) * g0 + frac * g1)
    return jnp.stack(feats, axis=3)


if __name__ == "__main__":
    key = jax.random.PRNGKey(0)
    B, N, J, P, K = 2, 128, 8, 32, 8      # batch, query points, joints, pose points, knn
    L, C = 16, 16                         # Lx = Ly = Lz = L, feat_dim = C  (3*J*C = 384)
    ks = jax.random.split(key, 6)

    bounds = jnp.array([[-0.8, -1.2, -0.5], [0.9, 1.1, 0.7]], jnp.float32)
    lo, hi = bounds[0], bounds[1]
    query_points = lo + (hi - lo) * jax.random.uniform(ks[0], (B, N, 3), jnp.float32)
    query_poses = jax.random.normal(ks[1], (B, J, 4), jnp.float32)
    query_poses = query_poses / jnp.linalg.norm(query_poses, axis=-1, keepdims=True)
    pose_points = jax.random.normal(ks[2], (J, P, 4), jnp.float32)
    pose_points = pose_points / jnp.linalg.norm(pose_points, axis=-1, keepdims=True)

    def init_lines(k):
        return jax.random.uniform(k, (J, P, L, C), jnp.float32, -0.01, 0.01)

    params = dict(
        spacial_bounds=bounds,
        pose_points=pose_points,
        feat_lines_x=init_lines(ks[3]),
        feat_lines_y=init_lines(ks[4]),
        feat_lines_z=init_lines(ks[5]),
        knn=K,
    )

    out = jax.block_until_ready(pose_vocab_forward(query_points, query_poses, params))
    assert out.shape == (B, N, J, 3, C), out.shape

    ref = reference_forward(query_points, query_poses, params)
    max_err = float(jnp.max(jnp.abs(out - ref)))
    assert jnp.allclose(out, ref, atol=1e-5, rtol=1e-3), f"max abs err {max_err}"

    print("KERNEL_OK")
</pallas_src>

<mosaic_0001>
module attributes {stable_mosaic.version = 11 : i64} {
  func.func @_fused_kernel(%arg0: i32, %arg1: i32, %arg2: memref<1x128x3xf32, #tpu.memory_space<vmem>>, %arg3: memref<1x32x128xf32, #tpu.memory_space<vmem>>, %arg4: memref<32x48x128xf32, #tpu.memory_space<vmem>>, %arg5: memref<1x128x384xf32, #tpu.memory_space<vmem>>, %arg6: memref<48x128xf32, #tpu.memory_space<vmem>>) attributes {dimension_semantics = [#tpu.dimension_semantics<parallel>, #tpu.dimension_semantics<arbitrary>], iteration_bounds = array<i64: 2, 1>, scalar_prefetch = 0 : i64, scratch_operands = 1 : i64, tpu.core_type = #tpu.core_type<tc>, window_params = [{transform_indices = @transform_0, window_bounds = array<i64: 1, 128, 3>}, {transform_indices = @transform_1, window_bounds = array<i64: 1, 32, 128>}, {pipeline_mode = #tpu.pipeline_mode<synchronous>, transform_indices = @transform_2, window_bounds = array<i64: 32, 48, 128>}, {transform_indices = @transform_3, window_bounds = array<i64: 1, 128, 384>}]} {
    %c0_i32 = arith.constant 0 : i32
    %0 = arith.cmpi eq, %arg1, %c0_i32 : i32
    %1 = arith.extui %0 : i1 to i32
    %c0_i32_0 = arith.constant 0 : i32
    %2 = arith.cmpi ne, %1, %c0_i32_0 : i32
    scf.if %2 {
      %c0_44 = arith.constant 0 : index
      %c0_45 = arith.constant 0 : index
      %c0_46 = arith.constant 0 : index
      %125 = vector.load %arg3[%c0_44, %c0_45, %c0_46] : memref<1x32x128xf32, #tpu.memory_space<vmem>>, vector<1x1x128xf32>
      %126 = vector.shape_cast %125 : vector<1x1x128xf32> to vector<1x128xf32>
      %c0_47 = arith.constant 0 : index
      %c0_48 = arith.constant 0 : index
      %c0_49 = arith.constant 0 : index
      %127 = vector.load %arg4[%c0_47, %c0_48, %c0_49] : memref<32x48x128xf32, #tpu.memory_space<vmem>>, vector<1x48x128xf32>
      %128 = vector.shape_cast %127 : vector<1x48x128xf32> to vector<48x128xf32>
      %129 = vector.broadcast %126 : vector<1x128xf32> to vector<48x128xf32>
      %130 = arith.mulf %129, %128 : vector<48x128xf32>
      %c0_50 = arith.constant 0 : index
      %c1 = arith.constant 1 : index
      %c0_51 = arith.constant 0 : index
      %131 = vector.load %arg3[%c0_50, %c1, %c0_51] : memref<1x32x128xf32, #tpu.memory_space<vmem>>, vector<1x1x128xf32>
      %132 = vector.shape_cast %131 : vector<1x1x128xf32> to vector<1x128xf32>
      %c1_52 = arith.constant 1 : index
      %c0_53 = arith.constant 0 : index
      %c0_54 = arith.constant 0 : index
      %133 = vector.load %arg4[%c1_52, %c0_53, %c0_54] : memref<32x48x128xf32, #tpu.memory_space<vmem>>, vector<1x48x128xf32>
      %134 = vector.shape_cast %133 : vector<1x48x128xf32> to vector<48x128xf32>
      %135 = vector.broadcast %132 : vector<1x128xf32> to vector<48x128xf32>
      %136 = arith.mulf %135, %134 : vector<48x128xf32>
      %137 = arith.addf %130, %136 : vector<48x128xf32>
      %c0_55 = arith.constant 0 : index
      %c2 = arith.constant 2 : index
      %c0_56 = arith.constant 0 : index
      %138 = vector.load %arg3[%c0_55, %c2, %c0_56] : memref<1x32x128xf32, #tpu.memory_space<vmem>>, vector<1x1x128xf32>
      %139 = vector.shape_cast %138 : vector<1x1x128xf32> to vector<1x128xf32>
      %c2_57 = arith.constant 2 : index
      %c0_58 = arith.constant 0 : index
      %c0_59 = arith.constant 0 : index
      %140 = vector.load %arg4[%c2_57, %c0_58, %c0_59] : memref<32x48x128xf32, #tpu.memory_space<vmem>>, vector<1x48x128xf32>
      %141 = vector.shape_cast %140 : vector<1x48x128xf32> to vector<48x128xf32>
      %142 = vector.broadcast %139 : vector<1x128xf32> to vector<48x128xf32>
      %143 = arith.mulf %142, %141 : vector<48x128xf32>
      %144 = arith.addf %137, %143 : vector<48x128xf32>
      %c0_60 = arith.constant 0 : index
      %c3 = arith.constant 3 : index
      %c0_61 = arith.constant 0 : index
      %145 = vector.load %arg3[%c0_60, %c3, %c0_61] : memref<1x32x128xf32, #tpu.memory_space<vmem>>, vector<1x1x128xf32>
      %146 = vector.shape_cast %145 : vector<1x1x128xf32> to vector<1x128xf32>
      %c3_62 = arith.constant 3 : index
      %c0_63 = arith.constant 0 : index
      %c0_64 = arith.constant 0 : index
      %147 = vector.load %arg4[%c3_62, %c0_63, %c0_64] : memref<32x48x128xf32, #tpu.memory_space<vmem>>, vector<1x48x128xf32>
      %148 = vector.shape_cast %147 : vector<1x48x128xf32> to vector<48x128xf32>
      %149 = vector.broadcast %146 : vector<1x128xf32> to vector<48x128xf32>
      %150 = arith.mulf %149, %148 : vector<48x128xf32>
      %151 = arith.addf %144, %150 : vector<48x128xf32>
      %c0_65 = arith.constant 0 : index
      %c4 = arith.constant 4 : index
      %c0_66 = arith.constant 0 : index
      %152 = vector.load %arg3[%c0_65, %c4, %c0_66] : memref<1x32x128xf32, #tpu.memory_space<vmem>>, vector<1x1x128xf32>
      %153 = vector.shape_cast %152 : vector<1x1x128xf32> to vector<1x128xf32>
      %c4_67 = arith.constant 4 : index
      %c0_68 = arith.constant 0 : index
      %c0_69 = arith.constant 0 : index
      %154 = vector.load %arg4[%c4_67, %c0_68, %c0_69] : memref<32x48x128xf32, #tpu.memory_space<vmem>>, vector<1x48x128xf32>
      %155 = vector.shape_cast %154 : vector<1x48x128xf32> to vector<48x128xf32>
      %156 = vector.broadcast %153 : vector<1x128xf32> to vector<48x128xf32>
      %157 = arith.mulf %156, %155 : vector<48x128xf32>
      %158 = arith.addf %151, %157 : vector<48x128xf32>
      %c0_70 = arith.constant 0 : index
      %c5 = arith.constant 5 : index
      %c0_71 = arith.constant 0 : index
      %159 = vector.load %arg3[%c0_70, %c5, %c0_71] : memref<1x32x128xf32, #tpu.memory_space<vmem>>, vector<1x1x128xf32>
      %160 = vector.shape_cast %159 : vector<1x1x128xf32> to vector<1x128xf32>
      %c5_72 = arith.constant 5 : index
      %c0_73 = arith.constant 0 : index
      %c0_74 = arith.constant 0 : index
      %161 = vector.load %arg4[%c5_72, %c0_73, %c0_74] : memref<32x48x128xf32, #tpu.memory_space<vmem>>, vector<1x48x128xf32>
      %162 = vector.shape_cast %161 : vector<1x48x128xf32> to vector<48x128xf32>
      %163 = vector.broadcast %160 : vector<1x128xf32> to vector<48x128xf32>
      %164 = arith.mulf %163, %162 : vector<48x128xf32>
      %165 = arith.addf %158, %164 : vector<48x128xf32>
      %c0_75 = arith.constant 0 : index
      %c6 = arith.constant 6 : index
      %c0_76 = arith.constant 0 : index
      %166 = vector.load %arg3[%c0_75, %c6, %c0_76] : memref<1x32x128xf32, #tpu.memory_space<vmem>>, vector<1x1x128xf32>
      %167 = vector.shape_cast %166 : vector<1x1x128xf32> to vector<1x128xf32>
      %c6_77 = arith.constant 6 : index
      %c0_78 = arith.constant 0 : index
      %c0_79 = arith.constant 0 : index
      %168 = vector.load %arg4[%c6_77, %c0_78, %c0_79] : memref<32x48x128xf32, #tpu.memory_space<vmem>>, vector<1x48x128xf32>
      %169 = vector.shape_cast %168 : vector<1x48x128xf32> to vector<48x128xf32>
      %170 = vector.broadcast %167 : vector<1x128xf32> to vector<48x128xf32>
      %171 = arith.mulf %170, %169 : vector<48x128xf32>
      %172 = arith.addf %165, %171 : vector<48x128xf32>
      %c0_80 = arith.constant 0 : index
      %c7 = arith.constant 7 : index
      %c0_81 = arith.constant 0 : index
      %173 = vector.load %arg3[%c0_80, %c7, %c0_81] : memref<1x32x128xf32, #tpu.memory_space<vmem>>, vector<1x1x128xf32>
      %174 = vector.shape_cast %173 : vector<1x1x128xf32> to vector<1x128xf32>
      %c7_82 = arith.constant 7 : index
      %c0_83 = arith.constant 0 : index
      %c0_84 = arith.constant 0 : index
      %175 = vector.load %arg4[%c7_82, %c0_83, %c0_84] : memref<32x48x128xf32, #tpu.memory_space<vmem>>, vector<1x48x128xf32>
      %176 = vector.shape_cast %175 : vector<1x48x128xf32> to vector<48x128xf32>
      %177 = vector.broadcast %174 : vector<1x128xf32> to vector<48x128xf32>
      %178 = arith.mulf %177, %176 : vector<48x128xf32>
      %179 = arith.addf %172, %178 : vector<48x128xf32>
      %c0_85 = arith.constant 0 : index
      %c8 = arith.constant 8 : index
      %c0_86 = arith.constant 0 : index
      %180 = vector.load %arg3[%c0_85, %c8, %c0_86] : memref<1x32x128xf32, #tpu.memory_space<vmem>>, vector<1x1x128xf32>
      %181 = vector.shape_cast %180 : vector<1x1x128xf32> to vector<1x128xf32>
      %c8_87 = arith.constant 8 : index
      %c0_88 = arith.constant 0 : index
      %c0_89 = arith.constant 0 : index
      %182 = vector.load %arg4[%c8_87, %c0_88, %c0_89] : memref<32x48x128xf32, #tpu.memory_space<vmem>>, vector<1x48x128xf32>
      %183 = vector.shape_cast %182 : vector<1x48x128xf32> to vector<48x128xf32>
      %184 = vector.broadcast %181 : vector<1x128xf32> to vector<48x128xf32>
      %185 = arith.mulf %184, %183 : vector<48x128xf32>
      %186 = arith.addf %179, %185 : vector<48x128xf32>
      %c0_90 = arith.constant 0 : index
      %c9 = arith.constant 9 : index
      %c0_91 = arith.constant 0 : index
      %187 = vector.load %arg3[%c0_90, %c9, %c0_91] : memref<1x32x128xf32, #tpu.memory_space<vmem>>, vector<1x1x128xf32>
      %188 = vector.shape_cast %187 : vector<1x1x128xf32> to vector<1x128xf32>
      %c9_92 = arith.constant 9 : index
      %c0_93 = arith.constant 0 : index
      %c0_94 = arith.constant 0 : index
      %189 = vector.load %arg4[%c9_92, %c0_93, %c0_94] : memref<32x48x128xf32, #tpu.memory_space<vmem>>, vector<1x48x128xf32>
      %190 = vector.shape_cast %189 : vector<1x48x128xf32> to vector<48x128xf32>
      %191 = vector.broadcast %188 : vector<1x128xf32> to vector<48x128xf32>
      %192 = arith.mulf %191, %190 : vector<48x128xf32>
      %193 = arith.addf %186, %192 : vector<48x128xf32>
      %c0_95 = arith.constant 0 : index
      %c10 = arith.constant 10 : index
      %c0_96 = arith.constant 0 : index
      %194 = vector.load %arg3[%c0_95, %c10, %c0_96] : memref<1x32x128xf32, #tpu.memory_space<vmem>>, vector<1x1x128xf32>
      %195 = vector.shape_cast %194 : vector<1x1x128xf32> to vector<1x128xf32>
      %c10_97 = arith.constant 10 : index
      %c0_98 = arith.constant 0 : index
      %c0_99 = arith.constant 0 : index
      %196 = vector.load %arg4[%c10_97, %c0_98, %c0_99] : memref<32x48x128xf32, #tpu.memory_space<vmem>>, vector<1x48x128xf32>
      %197 = vector.shape_cast %196 : vector<1x48x128xf32> to vector<48x128xf32>
      %198 = vector.broadcast %195 : vector<1x128xf32> to vector<48x128xf32>
      %199 = arith.mulf %198, %197 : vector<48x128xf32>
      %200 = arith.addf %193, %199 : vector<48x128xf32>
      %c0_100 = arith.constant 0 : index
      %c11 = arith.constant 11 : index
      %c0_101 = arith.constant 0 : index
      %201 = vector.load %arg3[%c0_100, %c11, %c0_101] : memref<1x32x128xf32, #tpu.memory_space<vmem>>, vector<1x1x128xf32>
      %202 = vector.shape_cast %201 : vector<1x1x128xf32> to vector<1x128xf32>
      %c11_102 = arith.constant 11 : index
      %c0_103 = arith.constant 0 : index
      %c0_104 = arith.constant 0 : index
      %203 = vector.load %arg4[%c11_102, %c0_103, %c0_104] : memref<32x48x128xf32, #tpu.memory_space<vmem>>, vector<1x48x128xf32>
      %204 = vector.shape_cast %203 : vector<1x48x128xf32> to vector<48x128xf32>
      %205 = vector.broadcast %202 : vector<1x128xf32> to vector<48x128xf32>
      %206 = arith.mulf %205, %204 : vector<48x128xf32>
      %207 = arith.addf %200, %206 : vector<48x128xf32>
      %c0_105 = arith.constant 0 : index
      %c12 = arith.constant 12 : index
      %c0_106 = arith.constant 0 : index
      %208 = vector.load %arg3[%c0_105, %c12, %c0_106] : memref<1x32x128xf32, #tpu.memory_space<vmem>>, vector<1x1x128xf32>
      %209 = vector.shape_cast %208 : vector<1x1x128xf32> to vector<1x128xf32>
      %c12_107 = arith.constant 12 : index
      %c0_108 = arith.constant 0 : index
      %c0_109 = arith.constant 0 : index
      %210 = vector.load %arg4[%c12_107, %c0_108, %c0_109] : memref<32x48x128xf32, #tpu.memory_space<vmem>>, vector<1x48x128xf32>
      %211 = vector.shape_cast %210 : vector<1x48x128xf32> to vector<48x128xf32>
      %212 = vector.broadcast %209 : vector<1x128xf32> to vector<48x128xf32>
      %213 = arith.mulf %212, %211 : vector<48x128xf32>
      %214 = arith.addf %207, %213 : vector<48x128xf32>
      %c0_110 = arith.constant 0 : index
      %c13 = arith.constant 13 : index
      %c0_111 = arith.constant 0 : index
      %215 = vector.load %arg3[%c0_110, %c13, %c0_111] : memref<1x32x128xf32, #tpu.memory_space<vmem>>, vector<1x1x128xf32>
      %216 = vector.shape_cast %215 : vector<1x1x128xf32> to vector<1x128xf32>
      %c13_112 = arith.constant 13 : index
      %c0_113 = arith.constant 0 : index
      %c0_114 = arith.constant 0 : index
      %217 = vector.load %arg4[%c13_112, %c0_113, %c0_114] : memref<32x48x128xf32, #tpu.memory_space<vmem>>, vector<1x48x128xf32>
      %218 = vector.shape_cast %217 : vector<1x48x128xf32> to vector<48x128xf32>
      %219 = vector.broadcast %216 : vector<1x128xf32> to vector<48x128xf32>
      %220 = arith.mulf %219, %218 : vector<48x128xf32>
      %221 = arith.addf %214, %220 : vector<48x128xf32>
      %c0_115 = arith.constant 0 : index
      %c14 = arith.constant 14 : index
      %c0_116 = arith.constant 0 : index
      %222 = vector.load %arg3[%c0_115, %c14, %c0_116] : memref<1x32x128xf32, #tpu.memory_space<vmem>>, vector<1x1x128xf32>
      %223 = vector.shape_cast %222 : vector<1x1x128xf32> to vector<1x128xf32>
      %c14_117 = arith.constant 14 : index
      %c0_118 = arith.constant 0 : index
      %c0_119 = arith.constant 0 : index
      %224 = vector.load %arg4[%c14_117, %c0_118, %c0_119] : memref<32x48x128xf32, #tpu.memory_space<vmem>>, vector<1x48x128xf32>
      %225 = vector.shape_cast %224 : vector<1x48x128xf32> to vector<48x128xf32>
      %226 = vector.broadcast %223 : vector<1x128xf32> to vector<48x128xf32>
      %227 = arith.mulf %226, %225 : vector<48x128xf32>
      %228 = arith.addf %221, %227 : vector<48x128xf32>
      %c0_120 = arith.constant 0 : index
      %c15 = arith.constant 15 : index
      %c0_121 = arith.constant 0 : index
      %229 = vector.load %arg3[%c0_120, %c15, %c0_121] : memref<1x32x128xf32, #tpu.memory_space<vmem>>, vector<1x1x128xf32>
      %230 = vector.shape_cast %229 : vector<1x1x128xf32> to vector<1x128xf32>
      %c15_122 = arith.constant 15 : index
      %c0_123 = arith.constant 0 : index
      %c0_124 = arith.constant 0 : index
      %231 = vector.load %arg4[%c15_122, %c0_123, %c0_124] : memref<32x48x128xf32, #tpu.memory_space<vmem>>, vector<1x48x128xf32>
      %232 = vector.shape_cast %231 : vector<1x48x128xf32> to vector<48x128xf32>
      %233 = vector.broadcast %230 : vector<1x128xf32> to vector<48x128xf32>
      %234 = arith.mulf %233, %232 : vector<48x128xf32>
      %235 = arith.addf %228, %234 : vector<48x128xf32>
      %c0_125 = arith.constant 0 : index
      %c16_126 = arith.constant 16 : index
      %c0_127 = arith.constant 0 : index
      %236 = vector.load %arg3[%c0_125, %c16_126, %c0_127] : memref<1x32x128xf32, #tpu.memory_space<vmem>>, vector<1x1x128xf32>
      %237 = vector.shape_cast %236 : vector<1x1x128xf32> to vector<1x128xf32>
      %c16_128 = arith.constant 16 : index
      %c0_129 = arith.constant 0 : index
      %c0_130 = arith.constant 0 : index
      %238 = vector.load %arg4[%c16_128, %c0_129, %c0_130] : memref<32x48x128xf32, #tpu.memory_space<vmem>>, vector<1x48x128xf32>
      %239 = vector.shape_cast %238 : vector<1x48x128xf32> to vector<48x128xf32>
      %240 = vector.broadcast %237 : vector<1x128xf32> to vector<48x128xf32>
      %241 = arith.mulf %240, %239 : vector<48x128xf32>
      %242 = arith.addf %235, %241 : vector<48x128xf32>
      %c0_131 = arith.constant 0 : index
      %c17 = arith.constant 17 : index
      %c0_132 = arith.constant 0 : index
      %243 = vector.load %arg3[%c0_131, %c17, %c0_132] : memref<1x32x128xf32, #tpu.memory_space<vmem>>, vector<1x1x128xf32>
      %244 = vector.shape_cast %243 : vector<1x1x128xf32> to vector<1x128xf32>
      %c17_133 = arith.constant 17 : index
      %c0_134 = arith.constant 0 : index
      %c0_135 = arith.constant 0 : index
      %245 = vector.load %arg4[%c17_133, %c0_134, %c0_135] : memref<32x48x128xf32, #tpu.memory_space<vmem>>, vector<1x48x128xf32>
      %246 = vector.shape_cast %245 : vector<1x48x128xf32> to vector<48x128xf32>
      %247 = vector.broadcast %244 : vector<1x128xf32> to vector<48x128xf32>
      %248 = arith.mulf %247, %246 : vector<48x128xf32>
      %249 = arith.addf %242, %248 : vector<48x128xf32>
      %c0_136 = arith.constant 0 : index
      %c18 = arith.constant 18 : index
      %c0_137 = arith.constant 0 : index
      %250 = vector.load %arg3[%c0_136, %c18, %c0_137] : memref<1x32x128xf32, #tpu.memory_space<vmem>>, vector<1x1x128xf32>
      %251 = vector.shape_cast %250 : vector<1x1x128xf32> to vector<1x128xf32>
      %c18_138 = arith.constant 18 : index
      %c0_139 = arith.constant 0 : index
      %c0_140 = arith.constant 0 : index
      %252 = vector.load %arg4[%c18_138, %c0_139, %c0_140] : memref<32x48x128xf32, #tpu.memory_space<vmem>>, vector<1x48x128xf32>
      %253 = vector.shape_cast %252 : vector<1x48x128xf32> to vector<48x128xf32>
      %254 = vector.broadcast %251 : vector<1x128xf32> to vector<48x128xf32>
      %255 = arith.mulf %254, %253 : vector<48x128xf32>
      %256 = arith.addf %249, %255 : vector<48x128xf32>
      %c0_141 = arith.constant 0 : index
      %c19 = arith.constant 19 : index
      %c0_142 = arith.constant 0 : index
      %257 = vector.load %arg3[%c0_141, %c19, %c0_142] : memref<1x32x128xf32, #tpu.memory_space<vmem>>, vector<1x1x128xf32>
      %258 = vector.shape_cast %257 : vector<1x1x128xf32> to vector<1x128xf32>
      %c19_143 = arith.constant 19 : index
      %c0_144 = arith.constant 0 : index
      %c0_145 = arith.constant 0 : index
      %259 = vector.load %arg4[%c19_143, %c0_144, %c0_145] : memref<32x48x128xf32, #tpu.memory_space<vmem>>, vector<1x48x128xf32>
      %260 = vector.shape_cast %259 : vector<1x48x128xf32> to vector<48x128xf32>
      %261 = vector.broadcast %258 : vector<1x128xf32> to vector<48x128xf32>
      %262 = arith.mulf %261, %260 : vector<48x128xf32>
      %263 = arith.addf %256, %262 : vector<48x128xf32>
      %c0_146 = arith.constant 0 : index
      %c20 = arith.constant 20 : index
      %c0_147 = arith.constant 0 : index
      %264 = vector.load %arg3[%c0_146, %c20, %c0_147] : memref<1x32x128xf32, #tpu.memory_space<vmem>>, vector<1x1x128xf32>
      %265 = vector.shape_cast %264 : vector<1x1x128xf32> to vector<1x128xf32>
      %c20_148 = arith.constant 20 : index
      %c0_149 = arith.constant 0 : index
      %c0_150 = arith.constant 0 : index
      %266 = vector.load %arg4[%c20_148, %c0_149, %c0_150] : memref<32x48x128xf32, #tpu.memory_space<vmem>>, vector<1x48x128xf32>
      %267 = vector.shape_cast %266 : vector<1x48x128xf32> to vector<48x128xf32>
      %268 = vector.broadcast %265 : vector<1x128xf32> to vector<48x128xf32>
      %269 = arith.mulf %268, %267 : vector<48x128xf32>
      %270 = arith.addf %263, %269 : vector<48x128xf32>
      %c0_151 = arith.constant 0 : index
      %c21 = arith.constant 21 : index
      %c0_152 = arith.constant 0 : index
      %271 = vector.load %arg3[%c0_151, %c21, %c0_152] : memref<1x32x128xf32, #tpu.memory_space<vmem>>, vector<1x1x128xf32>
      %272 = vector.shape_cast %271 : vector<1x1x128xf32> to vector<1x128xf32>
      %c21_153 = arith.constant 21 : index
      %c0_154 = arith.constant 0 : index
      %c0_155 = arith.constant 0 : index
      %273 = vector.load %arg4[%c21_153, %c0_154, %c0_155] : memref<32x48x128xf32, #tpu.memory_space<vmem>>, vector<1x48x128xf32>
      %274 = vector.shape_cast %273 : vector<1x48x128xf32> to vector<48x128xf32>
      %275 = vector.broadcast %272 : vector<1x128xf32> to vector<48x128xf32>
      %276 = arith.mulf %275, %274 : vector<48x128xf32>
      %277 = arith.addf %270, %276 : vector<48x128xf32>
      %c0_156 = arith.constant 0 : index
      %c22 = arith.constant 22 : index
      %c0_157 = arith.constant 0 : index
      %278 = vector.load %arg3[%c0_156, %c22, %c0_157] : memref<1x32x128xf32, #tpu.memory_space<vmem>>, vector<1x1x128xf32>
      %279 = vector.shape_cast %278 : vector<1x1x128xf32> to vector<1x128xf32>
      %c22_158 = arith.constant 22 : index
      %c0_159 = arith.constant 0 : index
      %c0_160 = arith.constant 0 : index
      %280 = vector.load %arg4[%c22_158, %c0_159, %c0_160] : memref<32x48x128xf32, #tpu.memory_space<vmem>>, vector<1x48x128xf32>
      %281 = vector.shape_cast %280 : vector<1x48x128xf32> to vector<48x128xf32>
      %282 = vector.broadcast %279 : vector<1x128xf32> to vector<48x128xf32>
      %283 = arith.mulf %282, %281 : vector<48x128xf32>
      %284 = arith.addf %277, %283 : vector<48x128xf32>
      %c0_161 = arith.constant 0 : index
      %c23 = arith.constant 23 : index
      %c0_162 = arith.constant 0 : index
      %285 = vector.load %arg3[%c0_161, %c23, %c0_162] : memref<1x32x128xf32, #tpu.memory_space<vmem>>, vector<1x1x128xf32>
      %286 = vector.shape_cast %285 : vector<1x1x128xf32> to vector<1x128xf32>
      %c23_163 = arith.constant 23 : index
      %c0_164 = arith.constant 0 : index
      %c0_165 = arith.constant 0 : index
      %287 = vector.load %arg4[%c23_163, %c0_164, %c0_165] : memref<32x48x128xf32, #tpu.memory_space<vmem>>, vector<1x48x128xf32>
      %288 = vector.shape_cast %287 : vector<1x48x128xf32> to vector<48x128xf32>
      %289 = vector.broadcast %286 : vector<1x128xf32> to vector<48x128xf32>
      %290 = arith.mulf %289, %288 : vector<48x128xf32>
      %291 = arith.addf %284, %290 : vector<48x128xf32>
      %c0_166 = arith.constant 0 : index
      %c24 = arith.constant 24 : index
      %c0_167 = arith.constant 0 : index
      %292 = vector.load %arg3[%c0_166, %c24, %c0_167] : memref<1x32x128xf32, #tpu.memory_space<vmem>>, vector<1x1x128xf32>
      %293 = vector.shape_cast %292 : vector<1x1x128xf32> to vector<1x128xf32>
      %c24_168 = arith.constant 24 : index
      %c0_169 = arith.constant 0 : index
      %c0_170 = arith.constant 0 : index
      %294 = vector.load %arg4[%c24_168, %c0_169, %c0_170] : memref<32x48x128xf32, #tpu.memory_space<vmem>>, vector<1x48x128xf32>
      %295 = vector.shape_cast %294 : vector<1x48x128xf32> to vector<48x128xf32>
      %296 = vector.broadcast %293 : vector<1x128xf32> to vector<48x128xf32>
      %297 = arith.mulf %296, %295 : vector<48x128xf32>
      %298 = arith.addf %291, %297 : vector<48x128xf32>
      %c0_171 = arith.constant 0 : index
      %c25 = arith.constant 25 : index
      %c0_172 = arith.constant 0 : index
      %299 = vector.load %arg3[%c0_171, %c25, %c0_172] : memref<1x32x128xf32, #tpu.memory_space<vmem>>, vector<1x1x128xf32>
      %300 = vector.shape_cast %299 : vector<1x1x128xf32> to vector<1x128xf32>
      %c25_173 = arith.constant 25 : index
      %c0_174 = arith.constant 0 : index
      %c0_175 = arith.constant 0 : index
      %301 = vector.load %arg4[%c25_173, %c0_174, %c0_175] : memref<32x48x128xf32, #tpu.memory_space<vmem>>, vector<1x48x128xf32>
      %302 = vector.shape_cast %301 : vector<1x48x128xf32> to vector<48x128xf32>
      %303 = vector.broadcast %300 : vector<1x128xf32> to vector<48x128xf32>
      %304 = arith.mulf %303, %302 : vector<48x128xf32>
      %305 = arith.addf %298, %304 : vector<48x128xf32>
      %c0_176 = arith.constant 0 : index
      %c26 = arith.constant 26 : index
      %c0_177 = arith.constant 0 : index
      %306 = vector.load %arg3[%c0_176, %c26, %c0_177] : memref<1x32x128xf32, #tpu.memory_space<vmem>>, vector<1x1x128xf32>
      %307 = vector.shape_cast %306 : vector<1x1x128xf32> to vector<1x128xf32>
      %c26_178 = arith.constant 26 : index
      %c0_179 = arith.constant 0 : index
      %c0_180 = arith.constant 0 : index
      %308 = vector.load %arg4[%c26_178, %c0_179, %c0_180] : memref<32x48x128xf32, #tpu.memory_space<vmem>>, vector<1x48x128xf32>
      %309 = vector.shape_cast %308 : vector<1x48x128xf32> to vector<48x128xf32>
      %310 = vector.broadcast %307 : vector<1x128xf32> to vector<48x128xf32>
      %311 = arith.mulf %310, %309 : vector<48x128xf32>
      %312 = arith.addf %305, %311 : vector<48x128xf32>
      %c0_181 = arith.constant 0 : index
      %c27 = arith.constant 27 : index
      %c0_182 = arith.constant 0 : index
      %313 = vector.load %arg3[%c0_181, %c27, %c0_182] : memref<1x32x128xf32, #tpu.memory_space<vmem>>, vector<1x1x128xf32>
      %314 = vector.shape_cast %313 : vector<1x1x128xf32> to vector<1x128xf32>
      %c27_183 = arith.constant 27 : index
      %c0_184 = arith.constant 0 : index
      %c0_185 = arith.constant 0 : index
      %315 = vector.load %arg4[%c27_183, %c0_184, %c0_185] : memref<32x48x128xf32, #tpu.memory_space<vmem>>, vector<1x48x128xf32>
      %316 = vector.shape_cast %315 : vector<1x48x128xf32> to vector<48x128xf32>
      %317 = vector.broadcast %314 : vector<1x128xf32> to vector<48x128xf32>
      %318 = arith.mulf %317, %316 : vector<48x128xf32>
      %319 = arith.addf %312, %318 : vector<48x128xf32>
      %c0_186 = arith.constant 0 : index
      %c28 = arith.constant 28 : index
      %c0_187 = arith.constant 0 : index
      %320 = vector.load %arg3[%c0_186, %c28, %c0_187] : memref<1x32x128xf32, #tpu.memory_space<vmem>>, vector<1x1x128xf32>
      %321 = vector.shape_cast %320 : vector<1x1x128xf32> to vector<1x128xf32>
      %c28_188 = arith.constant 28 : index
      %c0_189 = arith.constant 0 : index
      %c0_190 = arith.constant 0 : index
      %322 = vector.load %arg4[%c28_188, %c0_189, %c0_190] : memref<32x48x128xf32, #tpu.memory_space<vmem>>, vector<1x48x128xf32>
      %323 = vector.shape_cast %322 : vector<1x48x128xf32> to vector<48x128xf32>
      %324 = vector.broadcast %321 : vector<1x128xf32> to vector<48x128xf32>
      %325 = arith.mulf %324, %323 : vector<48x128xf32>
      %326 = arith.addf %319, %325 : vector<48x128xf32>
      %c0_191 = arith.constant 0 : index
      %c29 = arith.constant 29 : index
      %c0_192 = arith.constant 0 : index
      %327 = vector.load %arg3[%c0_191, %c29, %c0_192] : memref<1x32x128xf32, #tpu.memory_space<vmem>>, vector<1x1x128xf32>
      %328 = vector.shape_cast %327 : vector<1x1x128xf32> to vector<1x128xf32>
      %c29_193 = arith.constant 29 : index
      %c0_194 = arith.constant 0 : index
      %c0_195 = arith.constant 0 : index
      %329 = vector.load %arg4[%c29_193, %c0_194, %c0_195] : memref<32x48x128xf32, #tpu.memory_space<vmem>>, vector<1x48x128xf32>
      %330 = vector.shape_cast %329 : vector<1x48x128xf32> to vector<48x128xf32>
      %331 = vector.broadcast %328 : vector<1x128xf32> to vector<48x128xf32>
      %332 = arith.mulf %331, %330 : vector<48x128xf32>
      %333 = arith.addf %326, %332 : vector<48x128xf32>
      %c0_196 = arith.constant 0 : index
      %c30 = arith.constant 30 : index
      %c0_197 = arith.constant 0 : index
      %334 = vector.load %arg3[%c0_196, %c30, %c0_197] : memref<1x32x128xf32, #tpu.memory_space<vmem>>, vector<1x1x128xf32>
      %335 = vector.shape_cast %334 : vector<1x1x128xf32> to vector<1x128xf32>
      %c30_198 = arith.constant 30 : index
      %c0_199 = arith.constant 0 : index
      %c0_200 = arith.constant 0 : index
      %336 = vector.load %arg4[%c30_198, %c0_199, %c0_200] : memref<32x48x128xf32, #tpu.memory_space<vmem>>, vector<1x48x128xf32>
      %337 = vector.shape_cast %336 : vector<1x48x128xf32> to vector<48x128xf32>
      %338 = vector.broadcast %335 : vector<1x128xf32> to vector<48x128xf32>
      %339 = arith.mulf %338, %337 : vector<48x128xf32>
      %340 = arith.addf %333, %339 : vector<48x128xf32>
      %c0_201 = arith.constant 0 : index
      %c31 = arith.constant 31 : index
      %c0_202 = arith.constant 0 : index
      %341 = vector.load %arg3[%c0_201, %c31, %c0_202] : memref<1x32x128xf32, #tpu.memory_space<vmem>>, vector<1x1x128xf32>
      %342 = vector.shape_cast %341 : vector<1x1x128xf32> to vector<1x128xf32>
      %c31_203 = arith.constant 31 : index
      %c0_204 = arith.constant 0 : index
      %c0_205 = arith.constant 0 : index
      %343 = vector.load %arg4[%c31_203, %c0_204, %c0_205] : memref<32x48x128xf32, #tpu.memory_space<vmem>>, vector<1x48x128xf32>
      %344 = vector.shape_cast %343 : vector<1x48x128xf32> to vector<48x128xf32>
      %345 = vector.broadcast %342 : vector<1x128xf32> to vector<48x128xf32>
      %346 = arith.mulf %345, %344 : vector<48x128xf32>
      %347 = arith.addf %340, %346 : vector<48x128xf32>
      %c0_206 = arith.constant 0 : index
      %c0_207 = arith.constant 0 : index
      %348 = vector.load %arg6[%c0_206, %c0_207] : memref<48x128xf32, #tpu.memory_space<vmem>>, vector<48x128xf32>
      tpu.vector_store %arg6[%c0_206, %c0_207], %347 {strides = array<i32>} : memref<48x128xf32, #tpu.memory_space<vmem>>, vector<48x128xf32>,
    } else {
    }
    %c0 = arith.constant 0 : index
    %c0_1 = arith.constant 0 : index
    %c0_2 = arith.constant 0 : index
    %3 = vector.load %arg2[%c0, %c0_1, %c0_2] : memref<1x128x3xf32, #tpu.memory_space<vmem>>, vector<1x128x3xf32>
    %4 = vector.shape_cast %3 : vector<1x128x3xf32> to vector<128x3xf32>
    %5 = vector.extract_strided_slice %4 {offsets = [0, 0], sizes = [128, 1], strides = [1, 1]} : vector<128x3xf32> to vector<128x1xf32>
    %cst = arith.constant 1.000000e+00 : f32
    %6 = vector.broadcast %cst : f32 to vector<128x1xf32>
    %7 = arith.addf %5, %6 : vector<128x1xf32>
    %cst_3 = arith.constant 5.000000e-01 : f32
    %8 = vector.broadcast %cst_3 : f32 to vector<128x1xf32>
    %9 = arith.mulf %7, %8 : vector<128x1xf32>
    %cst_4 = arith.constant 1.500000e+01 : f32
    %10 = vector.broadcast %cst_4 : f32 to vector<128x1xf32>
    %11 = arith.mulf %9, %10 : vector<128x1xf32>
    %cst_5 = arith.constant 0.000000e+00 : f32
    %cst_6 = arith.constant 1.500000e+01 : f32
    %12 = vector.broadcast %cst_5 : f32 to vector<128x1xf32>
    %13 = arith.maximumf %12, %11 : vector<128x1xf32>
    %14 = vector.broadcast %cst_6 : f32 to vector<128x1xf32>
    %15 = arith.minimumf %14, %13 : vector<128x1xf32>
    %16 = math.floor %15 : vector<128x1xf32>
    %17 = arith.fptosi %16 : vector<128x1xf32> to vector<128x1xi32>
    %c1_i32 = arith.constant 1 : i32
    %18 = vector.broadcast %c1_i32 : i32 to vector<128x1xi32>
    %19 = arith.addi %17, %18 : vector<128x1xi32>
    %c15_i32 = arith.constant 15 : i32
    %20 = vector.broadcast %c15_i32 : i32 to vector<128x1xi32>
    %21 = arith.minsi %19, %20 : vector<128x1xi32>
    %22 = arith.sitofp %17 : vector<128x1xi32> to vector<128x1xf32>
    %23 = arith.subf %15, %22 : vector<128x1xf32>
    %24 = tpu.iota {dimensions = array<i32: 1>} : vector<128x16xi32>
    %25 = vector.broadcast %17 : vector<128x1xi32> to vector<128x16xi32>
    %26 = arith.cmpi eq, %24, %25 : vector<128x16xi32>
    %cst_7 = arith.constant 1.000000e+00 : f32
    %27 = vector.broadcast %cst_7 : f32 to vector<128x1xf32>
    %28 = arith.subf %27, %23 : vector<128x1xf32>
    %cst_8 = arith.constant 0.000000e+00 : f32
    %29 = vector.shape_cast %28 : vector<128x1xf32> to vector<128x1xf32>
    %30 = vector.broadcast %29 : vector<128x1xf32> to vector<128x16xf32>
    %31 = vector.broadcast %cst_8 : f32 to vector<128x16xf32>
    %32 = arith.select %26, %30, %31 : vector<128x16xi1>, vector<128x16xf32>
    %33 = vector.broadcast %21 : vector<128x1xi32> to vector<128x16xi32>
    %34 = arith.cmpi eq, %24, %33 : vector<128x16xi32>
    %cst_9 = arith.constant 0.000000e+00 : f32
    %35 = vector.shape_cast %23 : vector<128x1xf32> to vector<128x1xf32>
    %36 = vector.broadcast %35 : vector<128x1xf32> to vector<128x16xf32>
    %37 = vector.broadcast %cst_9 : f32 to vector<128x16xf32>
    %38 = arith.select %34, %36, %37 : vector<128x16xi1>, vector<128x16xf32>
    %39 = arith.addf %32, %38 : vector<128x16xf32>
    %c0_10 = arith.constant 0 : index
    %c0_11 = arith.constant 0 : index
    %40 = vector.load %arg6[%c0_10, %c0_11] : memref<48x128xf32, #tpu.memory_space<vmem>>, vector<16x128xf32>
    %cst_12 = arith.constant dense<0.000000e+00> : vector<128x128xf32>
    %41 = tpu.matmul %39, %40, %cst_12 {dimension_numbers = #tpu.dot_dimension_numbers<[1], [0], [0], [1], [0, 0, 1, 1], [], []>} : vector<128x16xf32>, vector<16x128xf32>, vector<128x128xf32> -> vector<128x128xf32>
    %c0_13 = arith.constant 0 : index
    %c0_14 = arith.constant 0 : index
    %c0_15 = arith.constant 0 : index
    %42 = vector.load %arg5[%c0_13, %c0_14, %c0_15] : memref<1x128x384xf32, #tpu.memory_space<vmem>>, vector<1x128x128xf32>
    %43 = vector.shape_cast %42 : vector<1x128x128xf32> to vector<128x128xf32>
    %44 = vector.shape_cast %41 : vector<128x128xf32> to vector<1x128x128xf32>
    tpu.vector_store %arg5[%c0_13, %c0_14, %c0_15], %44 {strides = array<i32>} : memref<1x128x384xf32, #tpu.memory_space<vmem>>, vector<1x128x128xf32>,
    %45 = vector.extract_strided_slice %4 {offsets = [0, 1], sizes = [128, 1], strides = [1, 1]} : vector<128x3xf32> to vector<128x1xf32>
    %cst_16 = arith.constant 1.000000e+00 : f32
    %46 = vector.broadcast %cst_16 : f32 to vector<128x1xf32>
    %47 = arith.addf %45, %46 : vector<128x1xf32>
    %cst_17 = arith.constant 5.000000e-01 : f32
    %48 = vector.broadcast %cst_17 : f32 to vector<128x1xf32>
    %49 = arith.mulf %47, %48 : vector<128x1xf32>
    %cst_18 = arith.constant 1.500000e+01 : f32
    %50 = vector.broadcast %cst_18 : f32 to vector<128x1xf32>
    %51 = arith.mulf %49, %50 : vector<128x1xf32>
    %cst_19 = arith.constant 0.000000e+00 : f32
    %cst_20 = arith.constant 1.500000e+01 : f32
    %52 = vector.broadcast %cst_19 : f32 to vector<128x1xf32>
    %53 = arith.maximumf %52, %51 : vector<128x1xf32>
    %54 = vector.broadcast %cst_20 : f32 to vector<128x1xf32>
    %55 = arith.minimumf %54, %53 : vector<128x1xf32>
    %56 = math.floor %55 : vector<128x1xf32>
    %57 = arith.fptosi %56 : vector<128x1xf32> to vector<128x1xi32>
    %c1_i32_21 = arith.constant 1 : i32
    %58 = vector.broadcast %c1_i32_21 : i32 to vector<128x1xi32>
    %59 = arith.addi %57, %58 : vector<128x1xi32>
    %c15_i32_22 = arith.constant 15 : i32
    %60 = vector.broadcast %c15_i32_22 : i32 to vector<128x1xi32>
    %61 = arith.minsi %59, %60 : vector<128x1xi32>
    %62 = arith.sitofp %57 : vector<128x1xi32> to vector<128x1xf32>
    %63 = arith.subf %55, %62 : vector<128x1xf32>
    %64 = tpu.iota {dimensions = array<i32: 1>} : vector<128x16xi32>
    %65 = vector.broadcast %57 : vector<128x1xi32> to vector<128x16xi32>
    %66 = arith.cmpi eq, %64, %65 : vector<128x16xi32>
    %cst_23 = arith.constant 1.000000e+00 : f32
    %67 = vector.broadcast %cst_23 : f32 to vector<128x1xf32>
    %68 = arith.subf %67, %63 : vector<128x1xf32>
    %cst_24 = arith.constant 0.000000e+00 : f32
    %69 = vector.shape_cast %68 : vector<128x1xf32> to vector<128x1xf32>
    %70 = vector.broadcast %69 : vector<128x1xf32> to vector<128x16xf32>
    %71 = vector.broadcast %cst_24 : f32 to vector<128x16xf32>
    %72 = arith.select %66, %70, %71 : vector<128x16xi1>, vector<128x16xf32>
    %73 = vector.broadcast %61 : vector<128x1xi32> to vector<128x16xi32>
    %74 = arith.cmpi eq, %64, %73 : vector<128x16xi32>
    %cst_25 = arith.constant 0.000000e+00 : f32
    %75 = vector.shape_cast %63 : vector<128x1xf32> to vector<128x1xf32>
    %76 = vector.broadcast %75 : vector<128x1xf32> to vector<128x16xf32>
    %77 = vector.broadcast %cst_25 : f32 to vector<128x16xf32>
    %78 = arith.select %74, %76, %77 : vector<128x16xi1>, vector<128x16xf32>
    %79 = arith.addf %72, %78 : vector<128x16xf32>
    %c16 = arith.constant 16 : index
    %c0_26 = arith.constant 0 : index
    %80 = vector.load %arg6[%c16, %c0_26] : memref<48x128xf32, #tpu.memory_space<vmem>>, vector<16x128xf32>
    %cst_27 = arith.constant dense<0.000000e+00> : vector<128x128xf32>
    %81 = tpu.matmul %79, %80, %cst_27 {dimension_numbers = #tpu.dot_dimension_numbers<[1], [0], [0], [1], [0, 0, 1, 1], [], []>} : vector<128x16xf32>, vector<16x128xf32>, vector<128x128xf32> -> vector<128x128xf32>
    %c0_28 = arith.constant 0 : index
    %c0_29 = arith.constant 0 : index
    %c128 = arith.constant 128 : index
    %82 = vector.load %arg5[%c0_28, %c0_29, %c128] : memref<1x128x384xf32, #tpu.memory_space<vmem>>, vector<1x128x128xf32>
    %83 = vector.shape_cast %82 : vector<1x128x128xf32> to vector<128x128xf32>
    %84 = vector.shape_cast %81 : vector<128x128xf32> to vector<1x128x128xf32>
    tpu.vector_store %arg5[%c0_28, %c0_29, %c128], %84 {strides = array<i32>} : memref<1x128x384xf32, #tpu.memory_space<vmem>>, vector<1x128x128xf32>,
    %85 = vector.extract_strided_slice %4 {offsets = [0, 2], sizes = [128, 1], strides = [1, 1]} : vector<128x3xf32> to vector<128x1xf32>
    %cst_30 = arith.constant 1.000000e+00 : f32
    %86 = vector.broadcast %cst_30 : f32 to vector<128x1xf32>
    %87 = arith.addf %85, %86 : vector<128x1xf32>
    %cst_31 = arith.constant 5.000000e-01 : f32
    %88 = vector.broadcast %cst_31 : f32 to vector<128x1xf32>
    %89 = arith.mulf %87, %88 : vector<128x1xf32>
    %cst_32 = arith.constant 1.500000e+01 : f32
    %90 = vector.broadcast %cst_32 : f32 to vector<128x1xf32>
    %91 = arith.mulf %89, %90 : vector<128x1xf32>
    %cst_33 = arith.constant 0.000000e+00 : f32
    %cst_34 = arith.constant 1.500000e+01 : f32
    %92 = vector.broadcast %cst_33 : f32 to vector<128x1xf32>
    %93 = arith.maximumf %92, %91 : vector<128x1xf32>
    %94 = vector.broadcast %cst_34 : f32 to vector<128x1xf32>
    %95 = arith.minimumf %94, %93 : vector<128x1xf32>
    %96 = math.floor %95 : vector<128x1xf32>
    %97 = arith.fptosi %96 : vector<128x1xf32> to vector<128x1xi32>
    %c1_i32_35 = arith.constant 1 : i32
    %98 = vector.broadcast %c1_i32_35 : i32 to vector<128x1xi32>
    %99 = arith.addi %97, %98 : vector<128x1xi32>
    %c15_i32_36 = arith.constant 15 : i32
    %100 = vector.broadcast %c15_i32_36 : i32 to vector<128x1xi32>
    %101 = arith.minsi %99, %100 : vector<128x1xi32>
    %102 = arith.sitofp %97 : vector<128x1xi32> to vector<128x1xf32>
    %103 = arith.subf %95, %102 : vector<128x1xf32>
    %104 = tpu.iota {dimensions = array<i32: 1>} : vector<128x16xi32>
    %105 = vector.broadcast %97 : vector<128x1xi32> to vector<128x16xi32>
    %106 = arith.cmpi eq, %104, %105 : vector<128x16xi32>
    %cst_37 = arith.constant 1.000000e+00 : f32
    %107 = vector.broadcast %cst_37 : f32 to vector<128x1xf32>
    %108 = arith.subf %107, %103 : vector<128x1xf32>
    %cst_38 = arith.constant 0.000000e+00 : f32
    %109 = vector.shape_cast %108 : vector<128x1xf32> to vector<128x1xf32>
    %110 = vector.broadcast %109 : vector<128x1xf32> to vector<128x16xf32>
    %111 = vector.broadcast %cst_38 : f32 to vector<128x16xf32>
    %112 = arith.select %106, %110, %111 : vector<128x16xi1>, vector<128x16xf32>
    %113 = vector.broadcast %101 : vector<128x1xi32> to vector<128x16xi32>
    %114 = arith.cmpi eq, %104, %113 : vector<128x16xi32>
    %cst_39 = arith.constant 0.000000e+00 : f32
    %115 = vector.shape_cast %103 : vector<128x1xf32> to vector<128x1xf32>
    %116 = vector.broadcast %115 : vector<128x1xf32> to vector<128x16xf32>
    %117 = vector.broadcast %cst_39 : f32 to vector<128x16xf32>
    %118 = arith.select %114, %116, %117 : vector<128x16xi1>, vector<128x16xf32>
    %119 = arith.addf %112, %118 : vector<128x16xf32>
    %c32 = arith.constant 32 : index
    %c0_40 = arith.constant 0 : index
    %120 = vector.load %arg6[%c32, %c0_40] : memref<48x128xf32, #tpu.memory_space<vmem>>, vector<16x128xf32>
    %cst_41 = arith.constant dense<0.000000e+00> : vector<128x128xf32>
    %121 = tpu.matmul %119, %120, %cst_41 {dimension_numbers = #tpu.dot_dimension_numbers<[1], [0], [0], [1], [0, 0, 1, 1], [], []>} : vector<128x16xf32>, vector<16x128xf32>, vector<128x128xf32> -> vector<128x128xf32>
    %c0_42 = arith.constant 0 : index
    %c0_43 = arith.constant 0 : index
    %c256 = arith.constant 256 : index
    %122 = vector.load %arg5[%c0_42, %c0_43, %c256] : memref<1x128x384xf32, #tpu.memory_space<vmem>>, vector<1x128x128xf32>
    %123 = vector.shape_cast %122 : vector<1x128x128xf32> to vector<128x128xf32>
    %124 = vector.shape_cast %121 : vector<128x128xf32> to vector<1x128x128xf32>
    tpu.vector_store %arg5[%c0_42, %c0_43, %c256], %124 {strides = array<i32>} : memref<1x128x384xf32, #tpu.memory_space<vmem>>, vector<1x128x128xf32>,
    return
  }
  func.func @transform_0(%arg0: i32, %arg1: i32) -> (i32, i32, i32) {
    %c0_i32 = arith.constant 0 : i32
    %c0_i32_0 = arith.constant 0 : i32
    return %arg0, %arg1, %c0_i32 : i32, i32, i32
  }
  func.func @transform_1(%arg0: i32, %arg1: i32) -> (i32, i32, i32) {
    %c0_i32 = arith.constant 0 : i32
    %c0_i32_0 = arith.constant 0 : i32
    %c0_i32_1 = arith.constant 0 : i32
    return %arg0, %c0_i32, %c0_i32_0 : i32, i32, i32
  }
  func.func @transform_2(%arg0: i32, %arg1: i32) -> (i32, i32, i32) {
    %c0_i32 = arith.constant 0 : i32
    %c0_i32_0 = arith.constant 0 : i32
    %c0_i32_1 = arith.constant 0 : i32
    %c0_i32_2 = arith.constant 0 : i32
    return %c0_i32, %c0_i32_0, %c0_i32_1 : i32, i32, i32
  }
  func.func @transform_3(%arg0: i32, %arg1: i32) -> (i32, i32, i32) {
    %c0_i32 = arith.constant 0 : i32
    %c0_i32_0 = arith.constant 0 : i32
    return %arg0, %arg1, %c0_i32 : i32, i32, i32
  }
}

</mosaic_0001>

<llo_original>
// kernel: tpu_custom_call.1
$region0: #{tpu_custom_call.1}
  #allocation0 [shape = 'u32[]', space=smem, size = 0x4, offset = 0x4, fixed_abs, tag = 'smem constant byte address 0x4 - core index']
  #allocation1 [shape = 'u32[72,128]{1,0:T(1,128)}', space=vmem, size = 0x9000, scoped, tag = 'internal scratch']
  #allocation2 [shape = 'f32[48,128]{1,0:T(8,128)}', space=vmem, size = 0x6000, scoped, tag = 'scratch operand']
  %s0 = inlined_call_operand.vmem [shape: f32[2,128,3], index: 0, kind: input, shape index: {}]
  %s1 = inlined_call_operand.vmem [shape: f32[2,32,128], index: 1, kind: input, shape index: {}]
  %s2 = inlined_call_operand.hbm [shape: f32[32,48,128], index: 2, kind: input, shape index: {}]
  %s3 = inlined_call_operand.hbm [shape: f32[2,128,384], index: 3, kind: output, shape index: {}]
  %s4 = sld [smem:[#allocation0]]
  $region53: #{tpu_custom_call.1} parent=0
    _
  %s6 = ssub.s32 1, %s4
  %s7 = scalar_select 0, %s6, %s4
  $region1: #{tpu_custom_call.1} parent=0
    #allocation3 [shape = 'u8[786432]{0}', space=vmem, size = 0xc0000, scoped, tag = 'input window, operand 2, single buffered']
    #allocation4 [shape = 's32[2]{0}', space=sflag, size = 0x8, scoped, tag = 'scoped memory for tpu_custom_call.1']
    #allocation5 [shape = 's32[2]{0}', space=sflag, size = 0x8, scoped, tag = 'scoped memory for tpu_custom_call.1']
    #allocation6 [shape = 'u8[393216]{0}', space=vmem, size = 0x60000, scoped, tag = 'output window, operand 0']
    %8 = vsyncpa [#allocation4], 0
    %9 = vsyncpa [#allocation5], 0
    %s10 = scalar_lea.sflag [#allocation5], 1
    %11 = vsyncpa %s10, 0
    loop: start=0, step=1, limit=4
    $region2: #{tpu_custom_call.1} parent=1 // loop_pre_header
      _
    $region3: #{tpu_custom_call.1} parent=1 // loop_header
      %s13 = sphi 0, %s17
      %p14 = scmp.ge.s32.totalorder %s13, 4
      %s20 = sphi 0, %s32
      %s21 = sphi 0, %s28
      %s22 = sphi 0, %s20
      %s23 = sphi 0, %s21
      %s24 = sphi 0, %s22
      %s25 = sphi 0, %s23
      %s37 = sphi 0, %s39
      %s40 = sphi 0, %s37
      %s41 = sphi 0, %s40
      %s57 = sphi 0, %s41
      %s63 = sphi 0, %s65
      %s66 = sphi 0, %s63
      %s67 = sphi 0, %s66
      %s83 = sphi 0, %s67
      %s87 = sphi 0, %s87
      %s89 = sphi 0, %s87
      %s90 = sphi 0, %s89
      %s104 = sphi 0, %s90
      %s112 = sphi 0, %s114
      %s115 = sphi 0, %s112
      %s116 = sphi 0, %s115
      %s132 = sphi 0, %s116
    $region4: #{tpu_custom_call.1} parent=1 // loop_header_branch
      %16 = sbr.rel (%p14) target = $region8
    $region5: #{tpu_custom_call.1} parent=1 // loop_body
      %s18 = ssub.s32 %s13, 1
      %s19 = ssub.s32 %s13, 2
      %s26 = sadd.s32 1, %s21
      %p27 = scmp.ge.s32.totalorder %s26, 1
      %s28 = scalar_select %p27, 0, %s26
      %s29 = sadd.s32 1, %s20
      %s30 = scalar_select %p27, %s29, %s20
      %p31 = scmp.ge.s32.totalorder %s30, 2
      %s32 = scalar_select %p31, 0, %s30
      %s33 = ssub.s32 %s20, %s32
      %s34 = ssub.s32 %s21, %s28
      %s35 = sor.u32 %s33, %s34
      %p36 = scmp.eq.s32.totalorder %s35, 0
      %s38 = sadd.s32 %s37, 1
      %s39 = scalar_select %p36, %s37, %s38
      %p42 = pneg %p36
      %p43 = scmp.eq.s32.totalorder %s13, 1
      %p44 = por %p42, %p43
      %p45 = scmp.ne.s32.totalorder %s37, %s40
      %p46 = scmp.eq.s32.totalorder %s13, 0
      %p47 = por %p45, %p46
      %p48 = scmp.ne.s32.totalorder %s37, %s40
      %p49 = scmp.eq.s32.totalorder %s18, 1
      %p50 = por %p48, %p49
      %p51 = scmp.ne.s32.totalorder %s40, %s41
      %p52 = scmp.eq.s32.totalorder %s18, 0
      %p53 = por %p51, %p52
      %p54 = scmp.ne.s32.totalorder %s40, %s41
      %p55 = scmp.eq.s32.totalorder %s19, 1
      %p56 = por %p54, %p55
      %p58 = scmp.ne.s32.totalorder %s41, %s57
      %p59 = scmp.eq.s32.totalorder %s19, 0
      %p60 = por %p58, %p59
      %s61 = ssub.s32 %s20, %s32
      %p62 = scmp.eq.s32.totalorder %s61, 0
      %s64 = sadd.s32 %s63, 1
      %s65 = scalar_select %p62, %s63, %s64
      %p68 = pneg %p62
      %p69 = scmp.eq.s32.totalorder %s13, 1
      %p70 = por %p68, %p69
      %p71 = scmp.ne.s32.totalorder %s63, %s66
      %p72 = scmp.eq.s32.totalorder %s13, 0
      %p73 = por %p71, %p72
      %p74 = scmp.ne.s32.totalorder %s63, %s66
      %p75 = scmp.eq.s32.totalorder %s18, 1
      %p76 = por %p74, %p75
      %p77 = scmp.ne.s32.totalorder %s66, %s67
      %p78 = scmp.eq.s32.totalorder %s18, 0
      %p79 = por %p77, %p78
      %p80 = scmp.ne.s32.totalorder %s66, %s67
      %p81 = scmp.eq.s32.totalorder %s19, 1
      %p82 = por %p80, %p81
      %p84 = scmp.ne.s32.totalorder %s67, %s83
      %p85 = scmp.eq.s32.totalorder %s19, 0
      %p86 = por %p84, %p85
      %s88 = sadd.s32 %s87, 1
      %p91 = scmp.eq.s32.totalorder %s13, 1
      %p92 = scmp.ne.s32.totalorder %s87, %s89
      %p93 = scmp.eq.s32.totalorder %s13, 0
      %p94 = por %p92, %p93
      %p95 = scmp.ne.s32.totalorder %s87, %s89
      %p96 = scmp.eq.s32.totalorder %s18, 1
      %p97 = por %p95, %p96
      %p98 = scmp.ne.s32.totalorder %s89, %s90
      %p99 = scmp.eq.s32.totalorder %s18, 0
      %p100 = por %p98, %p99
      %p101 = scmp.ne.s32.totalorder %s89, %s90
      %p102 = scmp.eq.s32.totalorder %s19, 1
      %p103 = por %p101, %p102
      %p105 = scmp.ne.s32.totalorder %s90, %s104
      %p106 = scmp.eq.s32.totalorder %s19, 0
      %p107 = por %p105, %p106
      %s108 = ssub.s32 %s20, %s32
      %s109 = ssub.s32 %s21, %s28
      %s110 = sor.u32 %s108, %s109
      %p111 = scmp.eq.s32.totalorder %s110, 0
      %s113 = sadd.s32 %s112, 1
      %s114 = scalar_select %p111, %s112, %s113
      %p117 = pneg %p111
      %p118 = scmp.eq.s32.totalorder %s13, 1
      %p119 = por %p117, %p118
      %p120 = scmp.ne.s32.totalorder %s112, %s115
      %p121 = scmp.eq.s32.totalorder %s13, 0
      %p122 = por %p120, %p121
      %p123 = scmp.ne.s32.totalorder %s112, %s115
      %p124 = scmp.eq.s32.totalorder %s18, 1
      %p125 = por %p123, %p124
      %p126 = scmp.ne.s32.totalorder %s115, %s116
      %p127 = scmp.eq.s32.totalorder %s18, 0
      %p128 = por %p126, %p127
      %p129 = scmp.ne.s32.totalorder %s115, %s116
      %p130 = scmp.eq.s32.totalorder %s19, 1
      %p131 = por %p129, %p130
      %p133 = scmp.ne.s32.totalorder %s116, %s132
      %p134 = scmp.eq.s32.totalorder %s19, 0
      %p135 = por %p133, %p134
      %p136 = scmp.le.s32.totalorder 1, %s13
      %p137 = scmp.lt.s32.totalorder %s13, 3
      %p138 = pnand %p136, %p137
      %p139 = pneg %p138
      // Predicated region
      $region9: #{tpu_custom_call.1} parent=5 // pred_check
        _
      $region10: #{tpu_custom_call.1} parent=5 // pred_check_branch
        %141 = sbr.rel (%p138) target = $region12
      $region11: #{tpu_custom_call.1} parent=5 // pred_region
        %s142 = ssub.s32 %s13, 1
        // Predicated region
        $region13: #{tpu_custom_call.1} parent=11 // pred_check
          %p143 = pneg %p100
        $region14: #{tpu_custom_call.1} parent=11 // pred_check_branch
          %145 = sbr.rel (%p143) target = $region16
        $region15: #{tpu_custom_call.1} parent=11 // pred_region
          %147 = vsyncadd [#allocation4], 0
          %s148 = sshll.u32 %s2, 4
          %s149 = int_to_ptr.hbm [resolvable:$true] %s148
          %s150 = sshll.u32 [#allocation3], 4
          %s151 = int_to_ptr.vmem [resolvable:$true] %s150
          %156 = dma.hbm_to_vmem [thread:$0]  %s149, 24576, %s151, [#allocation4], 128, 128, 8
        $region16: #{tpu_custom_call.1} parent=11 // pred_fallthru
          _
      $region12: #{tpu_custom_call.1} parent=5 // pred_fallthru
        _
      %p157 = scmp.lt.s32.totalorder %s13, 2
      // Predicated region
      $region17: #{tpu_custom_call.1} parent=5 // pred_check
        %p158 = pneg %p157
      $region18: #{tpu_custom_call.1} parent=5 // pred_check_branch
        %160 = sbr.rel (%p158) target = $region20
      $region19: #{tpu_custom_call.1} parent=5 // pred_region
        // Predicated region
        $region21: #{tpu_custom_call.1} parent=19 // pred_check
          %p161 = pneg %p47
        $region22: #{tpu_custom_call.1} parent=19 // pred_check_branch
          %163 = sbr.rel (%p161) target = $region24
        $region23: #{tpu_custom_call.1} parent=19 // pred_region
          %s164 = smul.u32 16, %s21
          %p165 = scmp.lt.s32.totalorder %s20, 1
          %s166 = scalar_select %p165, %s20, 1
          %p167 = scmp.lt.s32.totalorder %s164, 15
          %s168 = scalar_select %p167, %s164, 15
          %s169 = smul.addr %s166, 16
          %s170 = sadd.s32 %s168, %s169
          %s171 = smul.addr %s170, 8
          %s172 = scalar_lea.vmem %s0, %s171
          %s173 = smul.u32 16, %s21
        $region24: #{tpu_custom_call.1} parent=19 // pred_fallthru
          _
        // Predicated region
        $region25: #{tpu_custom_call.1} parent=19 // pred_check
          %p174 = pneg %p73
        $region26: #{tpu_custom_call.1} parent=19 // pred_check_branch
          %176 = sbr.rel (%p174) target = $region28
        $region27: #{tpu_custom_call.1} parent=19 // pred_region
          %p177 = scmp.lt.s32.totalorder %s20, 1
          %s178 = scalar_select %p177, %s20, 1
          %s179 = smul.addr %s178, 4
          %s180 = smul.addr %s179, 8
          %s181 = scalar_lea.vmem %s1, %s180
        $region28: #{tpu_custom_call.1} parent=19 // pred_fallthru
          _
      $region20: #{tpu_custom_call.1} parent=5 // pred_fallthru
        _
      %p182 = scmp.le.s32.totalorder 1, %s13
      %p183 = scmp.lt.s32.totalorder %s13, 3
      %p184 = pnand %p182, %p183
      %p185 = pneg %p184
      // Predicated region
      $region29: #{tpu_custom_call.1} parent=5 // pred_check
        _
      $region30: #{tpu_custom_call.1} parent=5 // pred_check_branch
        %187 = sbr.rel (%p184) target = $region32
      $region31: #{tpu_custom_call.1} parent=5 // pred_region
        %s188 = ssub.s32 %s13, 1
        // Predicated region
        $region33: #{tpu_custom_call.1} parent=31 // pred_check
          %p189 = pneg %p100
        $region34: #{tpu_custom_call.1} parent=31 // pred_check_branch
          %191 = sbr.rel (%p189) target = $region36
        $region35: #{tpu_custom_call.1} parent=31 // pred_region
          %193 = dma.done [#allocation4], 24576
        $region36: #{tpu_custom_call.1} parent=31 // pred_fallthru
          _
        %s194 = smul.u32 16, %s23
        %p195 = scmp.lt.s32.totalorder %s22, 1
        %s196 = scalar_select %p195, %s22, 1
        %p197 = scmp.lt.s32.totalorder %s194, 15
        %s198 = scalar_select %p197, %s194, 15
        %s199 = smul.addr %s196, 16
        %s200 = sadd.s32 %s198, %s199
        %s201 = smul.addr %s200, 8
        %s202 = scalar_lea.vmem %s0, %s201
        %p203 = pneg %p53
        %p204 = pneg %p50
        %p205 = scmp.lt.s32.totalorder %s22, 1
        %s206 = scalar_select %p205, %s22, 1
        %s207 = smul.addr %s206, 4
        %s208 = smul.addr %s207, 8
        %s209 = scalar_lea.vmem %s1, %s208
        %p210 = pneg %p79
        %p211 = pneg %p76
        %p212 = pneg %p100
        %p213 = pneg %p97
        %p214 = pneg %p128
        %p215 = pneg %p125
        %s216 = sand.u32 %s115, 1
        %s217 = scalar_lea.sflag [#allocation5], %s216
        %s218 = sand.u32 %s115, 1
        %s219 = smul.addr %s218, 384
        %s220 = scalar_lea.vmem [#allocation6], %s219
        %s221 = smul.u32 16, %s23
        %p222 = scmp.lt.s32.totalorder %s22, 1
        %s223 = scalar_select %p222, %s22, 1
        %p224 = scmp.lt.s32.totalorder %s221, 15
        %s225 = scalar_select %p224, %s221, 15
        %s226 = smul.addr %s223, 16
        %s227 = sadd.s32 %s225, %s226
        %s228 = smul.addr %s227, 8
        %s229 = scalar_lea.vmem %s0, %s228
        %s230 = smul.u32 16, %s23
        %p231 = scmp.lt.s32.totalorder %s22, 1
        %s232 = scalar_select %p231, %s22, 1
        %s233 = smul.addr %s232, 4
        %s234 = smul.addr %s233, 8
        %s235 = scalar_lea.vmem %s1, %s234
        %s236 = smul.u32 16, %s23
        %p237 = scmp.eq.s32.totalorder %s23, 0
        // Predicated region
        $region37: #{tpu_custom_call.1} parent=31 // pred_check
          %p238 = pneg %p237
        $region38: #{tpu_custom_call.1} parent=31 // pred_check_branch
          %240 = sbr.rel (%p238) target = $region40
        $region39: #{tpu_custom_call.1} parent=31 // pred_region
          %v241 = vld [vmem:[%s235] sm:$0x1]
          %v242 = vld [vmem:[#allocation3] sm:$0xff]
          %v243 = vld [vmem:[#allocation3 + $0x8] sm:$0xff]
          %v244 = vld [vmem:[#allocation3 + $0x10] sm:$0xff]
          %v245 = vld [vmem:[#allocation3 + $0x18] sm:$0xff]
          %v246 = vld [vmem:[#allocation3 + $0x20] sm:$0xff]
          %v247 = vld [vmem:[#allocation3 + $0x28] sm:$0xff]
          %v248 = vperm.slane %v241, 0
          %v249 = vmul.f32 %v248, %v242
          %v250 = vmul.f32 %v248, %v243
          %v251 = vmul.f32 %v248, %v244
          %v252 = vmul.f32 %v248, %v245
          %v253 = vmul.f32 %v248, %v246
          %v254 = vmul.f32 %v248, %v247
          %v255 = vld [vmem:[%s235 + $0x1] sm:$0x1]
          %s256 = scalar_lea.vmem [#allocation3], 48
          %v257 = vld [vmem:[%s256] sm:$0xff]
          %v258 = vld [vmem:[%s256 + $0x8] sm:$0xff]
          %v259 = vld [vmem:[%s256 + $0x10] sm:$0xff]
          %v260 = vld [vmem:[%s256 + $0x18] sm:$0xff]
          %v261 = vld [vmem:[%s256 + $0x20] sm:$0xff]
          %v262 = vld [vmem:[%s256 + $0x28] sm:$0xff]
          %v263 = vperm.slane %v255, 0
          %v264 = vmul.f32 %v263, %v257
          %v265 = vmul.f32 %v263, %v258
          %v266 = vmul.f32 %v263, %v259
          %v267 = vmul.f32 %v263, %v260
          %v268 = vmul.f32 %v263, %v261
          %v269 = vmul.f32 %v263, %v262
          %v270 = vadd.f32 %v249, %v264
          %v271 = vadd.f32 %v250, %v265
          %v272 = vadd.f32 %v251, %v266
          %v273 = vadd.f32 %v252, %v267
          %v274 = vadd.f32 %v253, %v268
          %v275 = vadd.f32 %v254, %v269
          %v276 = vld [vmem:[%s235 + $0x2] sm:$0x1]
          %s277 = scalar_lea.vmem [#allocation3], 96
          %v278 = vld [vmem:[%s277] sm:$0xff]
          %v279 = vld [vmem:[%s277 + $0x8] sm:$0xff]
          %v280 = vld [vmem:[%s277 + $0x10] sm:$0xff]
          %v281 = vld [vmem:[%s277 + $0x18] sm:$0xff]
          %v282 = vld [vmem:[%s277 + $0x20] sm:$0xff]
          %v283 = vld [vmem:[%s277 + $0x28] sm:$0xff]
          %v284 = vperm.slane %v276, 0
          %v285 = vmul.f32 %v284, %v278
          %v286 = vmul.f32 %v284, %v279
          %v287 = vmul.f32 %v284, %v280
          %v288 = vmul.f32 %v284, %v281
          %v289 = vmul.f32 %v284, %v282
          %v290 = vmul.f32 %v284, %v283
          %v291 = vadd.f32 %v270, %v285
          %v292 = vadd.f32 %v271, %v286
          %v293 = vadd.f32 %v272, %v287
          %v294 = vadd.f32 %v273, %v288
          %v295 = vadd.f32 %v274, %v289
          %v296 = vadd.f32 %v275, %v290
          %v297 = vld [vmem:[%s235 + $0x3] sm:$0x1]
          %s298 = scalar_lea.vmem [#allocation3], 144
          %v299 = vld [vmem:[%s298] sm:$0xff]
          %v300 = vld [vmem:[%s298 + $0x8] sm:$0xff]
          %v301 = vld [vmem:[%s298 + $0x10] sm:$0xff]
          %v302 = vld [vmem:[%s298 + $0x18] sm:$0xff]
          %v303 = vld [vmem:[%s298 + $0x20] sm:$0xff]
          %v304 = vld [vmem:[%s298 + $0x28] sm:$0xff]
          %v305 = vperm.slane %v297, 0
          %v306 = vmul.f32 %v305, %v299
          %v307 = vmul.f32 %v305, %v300
          %v308 = vmul.f32 %v305, %v301
          %v309 = vmul.f32 %v305, %v302
          %v310 = vmul.f32 %v305, %v303
          %v311 = vmul.f32 %v305, %v304
          %v312 = vadd.f32 %v291, %v306
          %v313 = vadd.f32 %v292, %v307
          %v314 = vadd.f32 %v293, %v308
          %v315 = vadd.f32 %v294, %v309
          %v316 = vadd.f32 %v295, %v310
          %v317 = vadd.f32 %v296, %v311
          %v318 = vld [vmem:[%s235 + $0x4] sm:$0x1]
          %s319 = scalar_lea.vmem [#allocation3], 192
          %v320 = vld [vmem:[%s319] sm:$0xff]
          %v321 = vld [vmem:[%s319 + $0x8] sm:$0xff]
          %v322 = vld [vmem:[%s319 + $0x10] sm:$0xff]
          %v323 = vld [vmem:[%s319 + $0x18] sm:$0xff]
          %v324 = vld [vmem:[%s319 + $0x20] sm:$0xff]
          %v325 = vld [vmem:[%s319 + $0x28] sm:$0xff]
          %v326 = vperm.slane %v318, 0
          %v327 = vmul.f32 %v326, %v320
          %v328 = vmul.f32 %v326, %v321
          %v329 = vmul.f32 %v326, %v322
          %v330 = vmul.f32 %v326, %v323
          %v331 = vmul.f32 %v326, %v324
          %v332 = vmul.f32 %v326, %v325
          %v333 = vadd.f32 %v312, %v327
          %v334 = vadd.f32 %v313, %v328
          %v335 = vadd.f32 %v314, %v329
          %v336 = vadd.f32 %v315, %v330
          %v337 = vadd.f32 %v316, %v331
          %v338 = vadd.f32 %v317, %v332
          %v339 = vld [vmem:[%s235 + $0x5] sm:$0x1]
          %s340 = scalar_lea.vmem [#allocation3], 240
          %v341 = vld [vmem:[%s340] sm:$0xff]
          %v342 = vld [vmem:[%s340 + $0x8] sm:$0xff]
          %v343 = vld [vmem:[%s340 + $0x10] sm:$0xff]
          %v344 = vld [vmem:[%s340 + $0x18] sm:$0xff]
          %v345 = vld [vmem:[%s340 + $0x20] sm:$0xff]
          %v346 = vld [vmem:[%s340 + $0x28] sm:$0xff]
          %v347 = vperm.slane %v339, 0
          %v348 = vmul.f32 %v347, %v341
          %v349 = vmul.f32 %v347, %v342
          %v350 = vmul.f32 %v347, %v343
          %v351 = vmul.f32 %v347, %v344
          %v352 = vmul.f32 %v347, %v345
          %v353 = vmul.f32 %v347, %v346
          %v354 = vadd.f32 %v333, %v348
          %v355 = vadd.f32 %v334, %v349
          %v356 = vadd.f32 %v335, %v350
          %v357 = vadd.f32 %v336, %v351
          %v358 = vadd.f32 %v337, %v352
          %v359 = vadd.f32 %v338, %v353
          %v360 = vld [vmem:[%s235 + $0x6] sm:$0x1]
          %s361 = scalar_lea.vmem [#allocation3], 288
          %v362 = vld [vmem:[%s361] sm:$0xff]
          %v363 = vld [vmem:[%s361 + $0x8] sm:$0xff]
          %v364 = vld [vmem:[%s361 + $0x10] sm:$0xff]
          %v365 = vld [vmem:[%s361 + $0x18] sm:$0xff]
          %v366 = vld [vmem:[%s361 + $0x20] sm:$0xff]
          %v367 = vld [vmem:[%s361 + $0x28] sm:$0xff]
          %v368 = vperm.slane %v360, 0
          %v369 = vmul.f32 %v368, %v362
          %v370 = vmul.f32 %v368, %v363
          %v371 = vmul.f32 %v368, %v364
          %v372 = vmul.f32 %v368, %v365
          %v373 = vmul.f32 %v368, %v366
          %v374 = vmul.f32 %v368, %v367
          %v375 = vadd.f32 %v354, %v369
          %v376 = vadd.f32 %v355, %v370
          %v377 = vadd.f32 %v356, %v371
          %v378 = vadd.f32 %v357, %v372
          %v379 = vadd.f32 %v358, %v373
          %v380 = vadd.f32 %v359, %v374
          %v381 = vld [vmem:[%s235 + $0x7] sm:$0x1]
          %s382 = scalar_lea.vmem [#allocation3], 336
          %v383 = vld [vmem:[%s382] sm:$0xff]
          %v384 = vld [vmem:[%s382 + $0x8] sm:$0xff]
          %v385 = vld [vmem:[%s382 + $0x10] sm:$0xff]
          %v386 = vld [vmem:[%s382 + $0x18] sm:$0xff]
          %v387 = vld [vmem:[%s382 + $0x20] sm:$0xff]
          %v388 = vld [vmem:[%s382 + $0x28] sm:$0xff]
          %v389 = vperm.slane %v381, 0
          %v390 = vmul.f32 %v389, %v383
          %v391 = vmul.f32 %v389, %v384
          %v392 = vmul.f32 %v389, %v385
          %v393 = vmul.f32 %v389, %v386
          %v394 = vmul.f32 %v389, %v387
          %v395 = vmul.f32 %v389, %v388
          %v396 = vadd.f32 %v375, %v390
          %v397 = vadd.f32 %v376, %v391
          %v398 = vadd.f32 %v377, %v392
          %v399 = vadd.f32 %v378, %v393
          %v400 = vadd.f32 %v379, %v394
          %v401 = vadd.f32 %v380, %v395
          %v402 = vld [vmem:[%s235 + $0x8] sm:$0x1]
          %s403 = scalar_lea.vmem [#allocation3], 384
          %v404 = vld [vmem:[%s403] sm:$0xff]
          %v405 = vld [vmem:[%s403 + $0x8] sm:$0xff]
          %v406 = vld [vmem:[%s403 + $0x10] sm:$0xff]
          %v407 = vld [vmem:[%s403 + $0x18] sm:$0xff]
          %v408 = vld [vmem:[%s403 + $0x20] sm:$0xff]
          %v409 = vld [vmem:[%s403 + $0x28] sm:$0xff]
          %v410 = vperm.slane %v402, 0
          %v411 = vmul.f32 %v410, %v404
          %v412 = vmul.f32 %v410, %v405
          %v413 = vmul.f32 %v410, %v406
          %v414 = vmul.f32 %v410, %v407
          %v415 = vmul.f32 %v410, %v408
          %v416 = vmul.f32 %v410, %v409
          %v417 = vadd.f32 %v396, %v411
          %v418 = vadd.f32 %v397, %v412
          %v419 = vadd.f32 %v398, %v413
          %v420 = vadd.f32 %v399, %v414
          %v421 = vadd.f32 %v400, %v415
          %v422 = vadd.f32 %v401, %v416
          %v423 = vld [vmem:[%s235 + $0x9] sm:$0x1]
          %s424 = scalar_lea.vmem [#allocation3], 432
          %v425 = vld [vmem:[%s424] sm:$0xff]
          %v426 = vld [vmem:[%s424 + $0x8] sm:$0xff]
          %v427 = vld [vmem:[%s424 + $0x10] sm:$0xff]
          %v428 = vld [vmem:[%s424 + $0x18] sm:$0xff]
          %v429 = vld [vmem:[%s424 + $0x20] sm:$0xff]
          %v430 = vld [vmem:[%s424 + $0x28] sm:$0xff]
          %v431 = vperm.slane %v423, 0
          %v432 = vmul.f32 %v431, %v425
          %v433 = vmul.f32 %v431, %v426
          %v434 = vmul.f32 %v431, %v427
          %v435 = vmul.f32 %v431, %v428
          %v436 = vmul.f32 %v431, %v429
          %v437 = vmul.f32 %v431, %v430
          %v438 = vadd.f32 %v417, %v432
          %v439 = vadd.f32 %v418, %v433
          %v440 = vadd.f32 %v419, %v434
          %v441 = vadd.f32 %v420, %v435
          %v442 = vadd.f32 %v421, %v436
          %v443 = vadd.f32 %v422, %v437
          %v444 = vld [vmem:[%s235 + $0xa] sm:$0x1]
          %s445 = scalar_lea.vmem [#allocation3], 480
          %v446 = vld [vmem:[%s445] sm:$0xff]
          %v447 = vld [vmem:[%s445 + $0x8] sm:$0xff]
          %v448 = vld [vmem:[%s445 + $0x10] sm:$0xff]
          %v449 = vld [vmem:[%s445 + $0x18] sm:$0xff]
          %v450 = vld [vmem:[%s445 + $0x20] sm:$0xff]
          %v451 = vld [vmem:[%s445 + $0x28] sm:$0xff]
          %v452 = vperm.slane %v444, 0
          %v453 = vmul.f32 %v452, %v446
          %v454 = vmul.f32 %v452, %v447
          %v455 = vmul.f32 %v452, %v448
          %v456 = vmul.f32 %v452, %v449
          %v457 = vmul.f32 %v452, %v450
          %v458 = vmul.f32 %v452, %v451
          %v459 = vadd.f32 %v438, %v453
          %v460 = vadd.f32 %v439, %v454
          %v461 = vadd.f32 %v440, %v455
          %v462 = vadd.f32 %v441, %v456
          %v463 = vadd.f32 %v442, %v457
          %v464 = vadd.f32 %v443, %v458
          %v465 = vld [vmem:[%s235 + $0xb] sm:$0x1]
          %s466 = scalar_lea.vmem [#allocation3], 528
          %v467 = vld [vmem:[%s466] sm:$0xff]
          %v468 = vld [vmem:[%s466 + $0x8] sm:$0xff]
          %v469 = vld [vmem:[%s466 + $0x10] sm:$0xff]
          %v470 = vld [vmem:[%s466 + $0x18] sm:$0xff]
          %v471 = vld [vmem:[%s466 + $0x20] sm:$0xff]
          %v472 = vld [vmem:[%s466 + $0x28] sm:$0xff]
          %v473 = vperm.slane %v465, 0
          %v474 = vmul.f32 %v473, %v467
          %v475 = vmul.f32 %v473, %v468
          %v476 = vmul.f32 %v473, %v469
          %v477 = vmul.f32 %v473, %v470
          %v478 = vmul.f32 %v473, %v471
          %v479 = vmul.f32 %v473, %v472
          %v480 = vadd.f32 %v459, %v474
          %v481 = vadd.f32 %v460, %v475
          %v482 = vadd.f32 %v461, %v476
          %v483 = vadd.f32 %v462, %v477
          %v484 = vadd.f32 %v463, %v478
          %v485 = vadd.f32 %v464, %v479
          %v486 = vld [vmem:[%s235 + $0xc] sm:$0x1]
          %s487 = scalar_lea.vmem [#allocation3], 576
          %v488 = vld [vmem:[%s487] sm:$0xff]
          %v489 = vld [vmem:[%s487 + $0x8] sm:$0xff]
          %v490 = vld [vmem:[%s487 + $0x10] sm:$0xff]
          %v491 = vld [vmem:[%s487 + $0x18] sm:$0xff]
          %v492 = vld [vmem:[%s487 + $0x20] sm:$0xff]
          %v493 = vld [vmem:[%s487 + $0x28] sm:$0xff]
          %v494 = vperm.slane %v486, 0
          %v495 = vmul.f32 %v494, %v488
          %v496 = vmul.f32 %v494, %v489
          %v497 = vmul.f32 %v494, %v490
          %v498 = vmul.f32 %v494, %v491
          %v499 = vmul.f32 %v494, %v492
          %v500 = vmul.f32 %v494, %v493
          %v501 = vadd.f32 %v480, %v495
          %v502 = vadd.f32 %v481, %v496
          %v503 = vadd.f32 %v482, %v497
          %v504 = vadd.f32 %v483, %v498
          %v505 = vadd.f32 %v484, %v499
          %v506 = vadd.f32 %v485, %v500
          %v507 = vld [vmem:[%s235 + $0xd] sm:$0x1]
          %s508 = scalar_lea.vmem [#allocation3], 624
          %v509 = vld [vmem:[%s508] sm:$0xff]
          %v510 = vld [vmem:[%s508 + $0x8] sm:$0xff]
          %v511 = vld [vmem:[%s508 + $0x10] sm:$0xff]
          %v512 = vld [vmem:[%s508 + $0x18] sm:$0xff]
          %v513 = vld [vmem:[%s508 + $0x20] sm:$0xff]
          %v514 = vld [vmem:[%s508 + $0x28] sm:$0xff]
          %v515 = vperm.slane %v507, 0
          %v516 = vmul.f32 %v515, %v509
          %v517 = vmul.f32 %v515, %v510
          %v518 = vmul.f32 %v515, %v511
          %v519 = vmul.f32 %v515, %v512
          %v520 = vmul.f32 %v515, %v513
          %v521 = vmul.f32 %v515, %v514
          %v522 = vadd.f32 %v501, %v516
          %v523 = vadd.f32 %v502, %v517
          %v524 = vadd.f32 %v503, %v518
          %v525 = vadd.f32 %v504, %v519
          %v526 = vadd.f32 %v505, %v520
          %v527 = vadd.f32 %v506, %v521
          %v528 = vld [vmem:[%s235 + $0xe] sm:$0x1]
          %s529 = scalar_lea.vmem [#allocation3], 672
          %v530 = vld [vmem:[%s529] sm:$0xff]
          %v531 = vld [vmem:[%s529 + $0x8] sm:$0xff]
          %v532 = vld [vmem:[%s529 + $0x10] sm:$0xff]
          %v533 = vld [vmem:[%s529 + $0x18] sm:$0xff]
          %v534 = vld [vmem:[%s529 + $0x20] sm:$0xff]
          %v535 = vld [vmem:[%s529 + $0x28] sm:$0xff]
          %v536 = vperm.slane %v528, 0
          %v537 = vmul.f32 %v536, %v530
          %v538 = vmul.f32 %v536, %v531
          %v539 = vmul.f32 %v536, %v532
          %v540 = vmul.f32 %v536, %v533
          %v541 = vmul.f32 %v536, %v534
          %v542 = vmul.f32 %v536, %v535
          %v543 = vadd.f32 %v522, %v537
          %v544 = vadd.f32 %v523, %v538
          %v545 = vadd.f32 %v524, %v539
          %v546 = vadd.f32 %v525, %v540
          %v547 = vadd.f32 %v526, %v541
          %v548 = vadd.f32 %v527, %v542
          %v549 = vld [vmem:[%s235 + $0xf] sm:$0x1]
          %s550 = scalar_lea.vmem [#allocation3], 720
          %v551 = vld [vmem:[%s550] sm:$0xff]
          %v552 = vld [vmem:[%s550 + $0x8] sm:$0xff]
          %v553 = vld [vmem:[%s550 + $0x10] sm:$0xff]
          %v554 = vld [vmem:[%s550 + $0x18] sm:$0xff]
          %v555 = vld [vmem:[%s550 + $0x20] sm:$0xff]
          %v556 = vld [vmem:[%s550 + $0x28] sm:$0xff]
          %v557 = vperm.slane %v549, 0
          %v558 = vmul.f32 %v557, %v551
          %v559 = vmul.f32 %v557, %v552
          %v560 = vmul.f32 %v557, %v553
          %v561 = vmul.f32 %v557, %v554
          %v562 = vmul.f32 %v557, %v555
          %v563 = vmul.f32 %v557, %v556
          %v564 = vadd.f32 %v543, %v558
          %v565 = vadd.f32 %v544, %v559
          %v566 = vadd.f32 %v545, %v560
          %v567 = vadd.f32 %v546, %v561
          %v568 = vadd.f32 %v547, %v562
          %v569 = vadd.f32 %v548, %v563
          %v570 = vld [vmem:[%s235 + $0x10] sm:$0x1]
          %s571 = scalar_lea.vmem [#allocation3], 768
          %v572 = vld [vmem:[%s571] sm:$0xff]
          %v573 = vld [vmem:[%s571 + $0x8] sm:$0xff]
          %v574 = vld [vmem:[%s571 + $0x10] sm:$0xff]
          %v575 = vld [vmem:[%s571 + $0x18] sm:$0xff]
          %v576 = vld [vmem:[%s571 + $0x20] sm:$0xff]
          %v577 = vld [vmem:[%s571 + $0x28] sm:$0xff]
          %v578 = vperm.slane %v570, 0
          %v579 = vmul.f32 %v578, %v572
          %v580 = vmul.f32 %v578, %v573
          %v581 = vmul.f32 %v578, %v574
          %v582 = vmul.f32 %v578, %v575
          %v583 = vmul.f32 %v578, %v576
          %v584 = vmul.f32 %v578, %v577
          %v585 = vadd.f32 %v564, %v579
          %v586 = vadd.f32 %v565, %v580
          %v587 = vadd.f32 %v566, %v581
          %v588 = vadd.f32 %v567, %v582
          %v589 = vadd.f32 %v568, %v583
          %v590 = vadd.f32 %v569, %v584
          %v591 = vld [vmem:[%s235 + $0x11] sm:$0x1]
          %s592 = scalar_lea.vmem [#allocation3], 816
          %v593 = vld [vmem:[%s592] sm:$0xff]
          %v594 = vld [vmem:[%s592 + $0x8] sm:$0xff]
          %v595 = vld [vmem:[%s592 + $0x10] sm:$0xff]
          %v596 = vld [vmem:[%s592 + $0x18] sm:$0xff]
          %v597 = vld [vmem:[%s592 + $0x20] sm:$0xff]
          %v598 = vld [vmem:[%s592 + $0x28] sm:$0xff]
          %v599 = vperm.slane %v591, 0
          %v600 = vmul.f32 %v599, %v593
          %v601 = vmul.f32 %v599, %v594
          %v602 = vmul.f32 %v599, %v595
          %v603 = vmul.f32 %v599, %v596
          %v604 = vmul.f32 %v599, %v597
          %v605 = vmul.f32 %v599, %v598
          %v606 = vadd.f32 %v585, %v600
          %v607 = vadd.f32 %v586, %v601
          %v608 = vadd.f32 %v587, %v602
          %v609 = vadd.f32 %v588, %v603
          %v610 = vadd.f32 %v589, %v604
          %v611 = vadd.f32 %v590, %v605
          %v612 = vld [vmem:[%s235 + $0x12] sm:$0x1]
          %s613 = scalar_lea.vmem [#allocation3], 864
          %v614 = vld [vmem:[%s613] sm:$0xff]
          %v615 = vld [vmem:[%s613 + $0x8] sm:$0xff]
          %v616 = vld [vmem:[%s613 + $0x10] sm:$0xff]
          %v617 = vld [vmem:[%s613 + $0x18] sm:$0xff]
          %v618 = vld [vmem:[%s613 + $0x20] sm:$0xff]
          %v619 = vld [vmem:[%s613 + $0x28] sm:$0xff]
          %v620 = vperm.slane %v612, 0
          %v621 = vmul.f32 %v620, %v614
          %v622 = vmul.f32 %v620, %v615
          %v623 = vmul.f32 %v620, %v616
          %v624 = vmul.f32 %v620, %v617
          %v625 = vmul.f32 %v620, %v618
          %v626 = vmul.f32 %v620, %v619
          %v627 = vadd.f32 %v606, %v621
          %v628 = vadd.f32 %v607, %v622
          %v629 = vadd.f32 %v608, %v623
          %v630 = vadd.f32 %v609, %v624
          %v631 = vadd.f32 %v610, %v625
          %v632 = vadd.f32 %v611, %v626
          %v633 = vld [vmem:[%s235 + $0x13] sm:$0x1]
          %s634 = scalar_lea.vmem [#allocation3], 912
          %v635 = vld [vmem:[%s634] sm:$0xff]
          %v636 = vld [vmem:[%s634 + $0x8] sm:$0xff]
          %v637 = vld [vmem:[%s634 + $0x10] sm:$0xff]
          %v638 = vld [vmem:[%s634 + $0x18] sm:$0xff]
          %v639 = vld [vmem:[%s634 + $0x20] sm:$0xff]
          %v640 = vld [vmem:[%s634 + $0x28] sm:$0xff]
          %v641 = vperm.slane %v633, 0
          %v642 = vmul.f32 %v641, %v635
          %v643 = vmul.f32 %v641, %v636
          %v644 = vmul.f32 %v641, %v637
          %v645 = vmul.f32 %v641, %v638
          %v646 = vmul.f32 %v641, %v639
          %v647 = vmul.f32 %v641, %v640
          %v648 = vadd.f32 %v627, %v642
          %v649 = vadd.f32 %v628, %v643
          %v650 = vadd.f32 %v629, %v644
          %v651 = vadd.f32 %v630, %v645
          %v652 = vadd.f32 %v631, %v646
          %v653 = vadd.f32 %v632, %v647
          %v654 = vld [vmem:[%s235 + $0x14] sm:$0x1]
          %s655 = scalar_lea.vmem [#allocation3], 960
          %v656 = vld [vmem:[%s655] sm:$0xff]
          %v657 = vld [vmem:[%s655 + $0x8] sm:$0xff]
          %v658 = vld [vmem:[%s655 + $0x10] sm:$0xff]
          %v659 = vld [vmem:[%s655 + $0x18] sm:$0xff]
          %v660 = vld [vmem:[%s655 + $0x20] sm:$0xff]
          %v661 = vld [vmem:[%s655 + $0x28] sm:$0xff]
          %v662 = vperm.slane %v654, 0
          %v663 = vmul.f32 %v662, %v656
          %v664 = vmul.f32 %v662, %v657
          %v665 = vmul.f32 %v662, %v658
          %v666 = vmul.f32 %v662, %v659
          %v667 = vmul.f32 %v662, %v660
          %v668 = vmul.f32 %v662, %v661
          %v669 = vadd.f32 %v648, %v663
          %v670 = vadd.f32 %v649, %v664
          %v671 = vadd.f32 %v650, %v665
          %v672 = vadd.f32 %v651, %v666
          %v673 = vadd.f32 %v652, %v667
          %v674 = vadd.f32 %v653, %v668
          %v675 = vld [vmem:[%s235 + $0x15] sm:$0x1]
          %s676 = scalar_lea.vmem [#allocation3], 1008
          %v677 = vld [vmem:[%s676] sm:$0xff]
          %v678 = vld [vmem:[%s676 + $0x8] sm:$0xff]
          %v679 = vld [vmem:[%s676 + $0x10] sm:$0xff]
          %v680 = vld [vmem:[%s676 + $0x18] sm:$0xff]
          %v681 = vld [vmem:[%s676 + $0x20] sm:$0xff]
          %v682 = vld [vmem:[%s676 + $0x28] sm:$0xff]
          %v683 = vperm.slane %v675, 0
          %v684 = vmul.f32 %v683, %v677
          %v685 = vmul.f32 %v683, %v678
          %v686 = vmul.f32 %v683, %v679
          %v687 = vmul.f32 %v683, %v680
          %v688 = vmul.f32 %v683, %v681
          %v689 = vmul.f32 %v683, %v682
          %v690 = vadd.f32 %v669, %v684
          %v691 = vadd.f32 %v670, %v685
          %v692 = vadd.f32 %v671, %v686
          %v693 = vadd.f32 %v672, %v687
          %v694 = vadd.f32 %v673, %v688
          %v695 = vadd.f32 %v674, %v689
          %v696 = vld [vmem:[%s235 + $0x16] sm:$0x1]
          %s697 = scalar_lea.vmem [#allocation3], 1056
          %v698 = vld [vmem:[%s697] sm:$0xff]
          %v699 = vld [vmem:[%s697 + $0x8] sm:$0xff]
          %v700 = vld [vmem:[%s697 + $0x10] sm:$0xff]
          %v701 = vld [vmem:[%s697 + $0x18] sm:$0xff]
          %v702 = vld [vmem:[%s697 + $0x20] sm:$0xff]
          %v703 = vld [vmem:[%s697 + $0x28] sm:$0xff]
          %v704 = vperm.slane %v696, 0
          %v705 = vmul.f32 %v704, %v698
          %v706 = vmul.f32 %v704, %v699
          %v707 = vmul.f32 %v704, %v700
          %v708 = vmul.f32 %v704, %v701
          %v709 = vmul.f32 %v704, %v702
          %v710 = vmul.f32 %v704, %v703
          %v711 = vadd.f32 %v690, %v705
          %v712 = vadd.f32 %v691, %v706
          %v713 = vadd.f32 %v692, %v707
          %v714 = vadd.f32 %v693, %v708
          %v715 = vadd.f32 %v694, %v709
          %v716 = vadd.f32 %v695, %v710
          %v717 = vld [vmem:[%s235 + $0x17] sm:$0x1]
          %s718 = scalar_lea.vmem [#allocation3], 1104
          %v719 = vld [vmem:[%s718] sm:$0xff]
          %v720 = vld [vmem:[%s718 + $0x8] sm:$0xff]
          %v721 = vld [vmem:[%s718 + $0x10] sm:$0xff]
          %v722 = vld [vmem:[%s718 + $0x18] sm:$0xff]
          %v723 = vld [vmem:[%s718 + $0x20] sm:$0xff]
          %v724 = vld [vmem:[%s718 + $0x28] sm:$0xff]
          %v725 = vperm.slane %v717, 0
          %v726 = vmul.f32 %v725, %v719
          %v727 = vmul.f32 %v725, %v720
          %v728 = vmul.f32 %v725, %v721
          %v729 = vmul.f32 %v725, %v722
          %v730 = vmul.f32 %v725, %v723
          %v731 = vmul.f32 %v725, %v724
          %v732 = vadd.f32 %v711, %v726
          %v733 = vadd.f32 %v712, %v727
          %v734 = vadd.f32 %v713, %v728
          %v735 = vadd.f32 %v714, %v729
          %v736 = vadd.f32 %v715, %v730
          %v737 = vadd.f32 %v716, %v731
          %v738 = vld [vmem:[%s235 + $0x18] sm:$0x1]
          %s739 = scalar_lea.vmem [#allocation3], 1152
          %v740 = vld [vmem:[%s739] sm:$0xff]
          %v741 = vld [vmem:[%s739 + $0x8] sm:$0xff]
          %v742 = vld [vmem:[%s739 + $0x10] sm:$0xff]
          %v743 = vld [vmem:[%s739 + $0x18] sm:$0xff]
          %v744 = vld [vmem:[%s739 + $0x20] sm:$0xff]
          %v745 = vld [vmem:[%s739 + $0x28] sm:$0xff]
          %v746 = vperm.slane %v738, 0
          %v747 = vmul.f32 %v746, %v740
          %v748 = vmul.f32 %v746, %v741
          %v749 = vmul.f32 %v746, %v742
          %v750 = vmul.f32 %v746, %v743
          %v751 = vmul.f32 %v746, %v744
          %v752 = vmul.f32 %v746, %v745
          %v753 = vadd.f32 %v732, %v747
          %v754 = vadd.f32 %v733, %v748
          %v755 = vadd.f32 %v734, %v749
          %v756 = vadd.f32 %v735, %v750
          %v757 = vadd.f32 %v736, %v751
          %v758 = vadd.f32 %v737, %v752
          %v759 = vld [vmem:[%s235 + $0x19] sm:$0x1]
          %s760 = scalar_lea.vmem [#allocation3], 1200
          %v761 = vld [vmem:[%s760] sm:$0xff]
          %v762 = vld [vmem:[%s760 + $0x8] sm:$0xff]
          %v763 = vld [vmem:[%s760 + $0x10] sm:$0xff]
          %v764 = vld [vmem:[%s760 + $0x18] sm:$0xff]
          %v765 = vld [vmem:[%s760 + $0x20] sm:$0xff]
          %v766 = vld [vmem:[%s760 + $0x28] sm:$0xff]
          %v767 = vperm.slane %v759, 0
          %v768 = vmul.f32 %v767, %v761
          %v769 = vmul.f32 %v767, %v762
          %v770 = vmul.f32 %v767, %v763
          %v771 = vmul.f32 %v767, %v764
          %v772 = vmul.f32 %v767, %v765
          %v773 = vmul.f32 %v767, %v766
          %v774 = vadd.f32 %v753, %v768
          %v775 = vadd.f32 %v754, %v769
          %v776 = vadd.f32 %v755, %v770
          %v777 = vadd.f32 %v756, %v771
          %v778 = vadd.f32 %v757, %v772
          %v779 = vadd.f32 %v758, %v773
          %v780 = vld [vmem:[%s235 + $0x1a] sm:$0x1]
          %s781 = scalar_lea.vmem [#allocation3], 1248
          %v782 = vld [vmem:[%s781] sm:$0xff]
          %v783 = vld [vmem:[%s781 + $0x8] sm:$0xff]
          %v784 = vld [vmem:[%s781 + $0x10] sm:$0xff]
          %v785 = vld [vmem:[%s781 + $0x18] sm:$0xff]
          %v786 = vld [vmem:[%s781 + $0x20] sm:$0xff]
          %v787 = vld [vmem:[%s781 + $0x28] sm:$0xff]
          %v788 = vperm.slane %v780, 0
          %v789 = vmul.f32 %v788, %v782
          %v790 = vmul.f32 %v788, %v783
          %v791 = vmul.f32 %v788, %v784
          %v792 = vmul.f32 %v788, %v785
          %v793 = vmul.f32 %v788, %v786
          %v794 = vmul.f32 %v788, %v787
          %v795 = vadd.f32 %v774, %v789
          %v796 = vadd.f32 %v775, %v790
          %v797 = vadd.f32 %v776, %v791
          %v798 = vadd.f32 %v777, %v792
          %v799 = vadd.f32 %v778, %v793
          %v800 = vadd.f32 %v779, %v794
          %v801 = vld [vmem:[%s235 + $0x1b] sm:$0x1]
          %s802 = scalar_lea.vmem [#allocation3], 1296
          %v803 = vld [vmem:[%s802] sm:$0xff]
          %v804 = vld [vmem:[%s802 + $0x8] sm:$0xff]
          %v805 = vld [vmem:[%s802 + $0x10] sm:$0xff]
          %v806 = vld [vmem:[%s802 + $0x18] sm:$0xff]
          %v807 = vld [vmem:[%s802 + $0x20] sm:$0xff]
          %v808 = vld [vmem:[%s802 + $0x28] sm:$0xff]
          %v809 = vperm.slane %v801, 0
          %v810 = vmul.f32 %v809, %v803
          %v811 = vmul.f32 %v809, %v804
          %v812 = vmul.f32 %v809, %v805
          %v813 = vmul.f32 %v809, %v806
          %v814 = vmul.f32 %v809, %v807
          %v815 = vmul.f32 %v809, %v808
          %v816 = vadd.f32 %v795, %v810
          %v817 = vadd.f32 %v796, %v811
          %v818 = vadd.f32 %v797, %v812
          %v819 = vadd.f32 %v798, %v813
          %v820 = vadd.f32 %v799, %v814
          %v821 = vadd.f32 %v800, %v815
          %v822 = vld [vmem:[%s235 + $0x1c] sm:$0x1]
          %s823 = scalar_lea.vmem [#allocation3], 1344
          %v824 = vld [vmem:[%s823] sm:$0xff]
          %v825 = vld [vmem:[%s823 + $0x8] sm:$0xff]
          %v826 = vld [vmem:[%s823 + $0x10] sm:$0xff]
          %v827 = vld [vmem:[%s823 + $0x18] sm:$0xff]
          %v828 = vld [vmem:[%s823 + $0x20] sm:$0xff]
          %v829 = vld [vmem:[%s823 + $0x28] sm:$0xff]
          %v830 = vperm.slane %v822, 0
          %v831 = vmul.f32 %v830, %v824
          %v832 = vmul.f32 %v830, %v825
          %v833 = vmul.f32 %v830, %v826
          %v834 = vmul.f32 %v830, %v827
          %v835 = vmul.f32 %v830, %v828
          %v836 = vmul.f32 %v830, %v829
          %v837 = vadd.f32 %v816, %v831
          %v838 = vadd.f32 %v817, %v832
          %v839 = vadd.f32 %v818, %v833
          %v840 = vadd.f32 %v819, %v834
          %v841 = vadd.f32 %v820, %v835
          %v842 = vadd.f32 %v821, %v836
          %v843 = vld [vmem:[%s235 + $0x1d] sm:$0x1]
          %s844 = scalar_lea.vmem [#allocation3], 1392
          %v845 = vld [vmem:[%s844] sm:$0xff]
          %v846 = vld [vmem:[%s844 + $0x8] sm:$0xff]
          %v847 = vld [vmem:[%s844 + $0x10] sm:$0xff]
          %v848 = vld [vmem:[%s844 + $0x18] sm:$0xff]
          %v849 = vld [vmem:[%s844 + $0x20] sm:$0xff]
          %v850 = vld [vmem:[%s844 + $0x28] sm:$0xff]
          %v851 = vperm.slane %v843, 0
          %v852 = vmul.f32 %v851, %v845
          %v853 = vmul.f32 %v851, %v846
          %v854 = vmul.f32 %v851, %v847
          %v855 = vmul.f32 %v851, %v848
          %v856 = vmul.f32 %v851, %v849
          %v857 = vmul.f32 %v851, %v850
          %v858 = vadd.f32 %v837, %v852
          %v859 = vadd.f32 %v838, %v853
          %v860 = vadd.f32 %v839, %v854
          %v861 = vadd.f32 %v840, %v855
          %v862 = vadd.f32 %v841, %v856
          %v863 = vadd.f32 %v842, %v857
          %v864 = vld [vmem:[%s235 + $0x1e] sm:$0x1]
          %s865 = scalar_lea.vmem [#allocation3], 1440
          %v866 = vld [vmem:[%s865] sm:$0xff]
          %v867 = vld [vmem:[%s865 + $0x8] sm:$0xff]
          %v868 = vld [vmem:[%s865 + $0x10] sm:$0xff]
          %v869 = vld [vmem:[%s865 + $0x18] sm:$0xff]
          %v870 = vld [vmem:[%s865 + $0x20] sm:$0xff]
          %v871 = vld [vmem:[%s865 + $0x28] sm:$0xff]
          %v872 = vperm.slane %v864, 0
          %v873 = vmul.f32 %v872, %v866
          %v874 = vmul.f32 %v872, %v867
          %v875 = vmul.f32 %v872, %v868
          %v876 = vmul.f32 %v872, %v869
          %v877 = vmul.f32 %v872, %v870
          %v878 = vmul.f32 %v872, %v871
          %v879 = vadd.f32 %v858, %v873
          %v880 = vadd.f32 %v859, %v874
          %v881 = vadd.f32 %v860, %v875
          %v882 = vadd.f32 %v861, %v876
          %v883 = vadd.f32 %v862, %v877
          %v884 = vadd.f32 %v863, %v878
          %v885 = vld [vmem:[%s235 + $0x1f] sm:$0x1]
          %s886 = scalar_lea.vmem [#allocation3], 1488
          %v887 = vld [vmem:[%s886] sm:$0xff]
          %v888 = vld [vmem:[%s886 + $0x8] sm:$0xff]
          %v889 = vld [vmem:[%s886 + $0x10] sm:$0xff]
          %v890 = vld [vmem:[%s886 + $0x18] sm:$0xff]
          %v891 = vld [vmem:[%s886 + $0x20] sm:$0xff]
          %v892 = vld [vmem:[%s886 + $0x28] sm:$0xff]
          %v893 = vperm.slane %v885, 0
          %v894 = vmul.f32 %v893, %v887
          %v895 = vmul.f32 %v893, %v888
          %v896 = vmul.f32 %v893, %v889
          %v897 = vmul.f32 %v893, %v890
          %v898 = vmul.f32 %v893, %v891
          %v899 = vmul.f32 %v893, %v892
          %v900 = vadd.f32 %v879, %v894
          %v901 = vadd.f32 %v880, %v895
          %v902 = vadd.f32 %v881, %v896
          %v903 = vadd.f32 %v882, %v897
          %v904 = vadd.f32 %v883, %v898
          %v905 = vadd.f32 %v884, %v899
          %906 = vst [vmem:[#allocation2] sm:$0xff] %v900
          %907 = vst [vmem:[#allocation2 + $0x8] sm:$0xff] %v901
          %908 = vst [vmem:[#allocation2 + $0x10] sm:$0xff] %v902
          %909 = vst [vmem:[#allocation2 + $0x18] sm:$0xff] %v903
          %910 = vst [vmem:[#allocation2 + $0x20] sm:$0xff] %v904
          %911 = vst [vmem:[#allocation2 + $0x28] sm:$0xff] %v905
        $region40: #{tpu_custom_call.1} parent=31 // pred_fallthru
          _
        %v912 = vld [vmem:[%s229] sm:$0xff]
        %v913 = vld [vmem:[%s229 + $0x8] sm:$0xff]
        %v914 = vld [vmem:[%s229 + $0x10] sm:$0xff]
        %v915 = vld [vmem:[%s229 + $0x18] sm:$0xff]
        %v916 = vld [vmem:[%s229 + $0x20] sm:$0xff]
        %v917 = vld [vmem:[%s229 + $0x28] sm:$0xff]
        %v918 = vld [vmem:[%s229 + $0x30] sm:$0xff]
        %v919 = vld [vmem:[%s229 + $0x38] sm:$0xff]
        %v920 = vld [vmem:[%s229 + $0x40] sm:$0xff]
        %v921 = vld [vmem:[%s229 + $0x48] sm:$0xff]
        %v922 = vld [vmem:[%s229 + $0x50] sm:$0xff]
        %v923 = vld [vmem:[%s229 + $0x58] sm:$0xff]
        %v924 = vld [vmem:[%s229 + $0x60] sm:$0xff]
        %v925 = vld [vmem:[%s229 + $0x68] sm:$0xff]
        %v926 = vld [vmem:[%s229 + $0x70] sm:$0xff]
        %v927 = vld [vmem:[%s229 + $0x78] sm:$0xff]
        %v928 = vadd.f32 %v912, 1.0
        %v929 = vadd.f32 %v913, 1.0
        %v930 = vadd.f32 %v914, 1.0
        %v931 = vadd.f32 %v915, 1.0
        %v932 = vadd.f32 %v916, 1.0
        %v933 = vadd.f32 %v917, 1.0
        %v934 = vadd.f32 %v918, 1.0
        %v935 = vadd.f32 %v919, 1.0
        %v936 = vadd.f32 %v920, 1.0
        %v937 = vadd.f32 %v921, 1.0
        %v938 = vadd.f32 %v922, 1.0
        %v939 = vadd.f32 %v923, 1.0
        %v940 = vadd.f32 %v924, 1.0
        %v941 = vadd.f32 %v925, 1.0
        %v942 = vadd.f32 %v926, 1.0
        %v943 = vadd.f32 %v927, 1.0
        %v944 = vmul.f32 %v928, 0.5
        %v945 = vmul.f32 %v929, 0.5
        %v946 = vmul.f32 %v930, 0.5
        %v947 = vmul.f32 %v931, 0.5
        %v948 = vmul.f32 %v932, 0.5
        %v949 = vmul.f32 %v933, 0.5
        %v950 = vmul.f32 %v934, 0.5
        %v951 = vmul.f32 %v935, 0.5
        %v952 = vmul.f32 %v936, 0.5
        %v953 = vmul.f32 %v937, 0.5
        %v954 = vmul.f32 %v938, 0.5
        %v955 = vmul.f32 %v939, 0.5
        %v956 = vmul.f32 %v940, 0.5
        %v957 = vmul.f32 %v941, 0.5
        %v958 = vmul.f32 %v942, 0.5
        %v959 = vmul.f32 %v943, 0.5
        %v960 = vmul.f32 %v944, 15.0
        %v961 = vmul.f32 %v945, 15.0
        %v962 = vmul.f32 %v946, 15.0
        %v963 = vmul.f32 %v947, 15.0
        %v964 = vmul.f32 %v948, 15.0
        %v965 = vmul.f32 %v949, 15.0
        %v966 = vmul.f32 %v950, 15.0
        %v967 = vmul.f32 %v951, 15.0
        %v968 = vmul.f32 %v952, 15.0
        %v969 = vmul.f32 %v953, 15.0
        %v970 = vmul.f32 %v954, 15.0
        %v971 = vmul.f32 %v955, 15.0
        %v972 = vmul.f32 %v956, 15.0
        %v973 = vmul.f32 %v957, 15.0
        %v974 = vmul.f32 %v958, 15.0
        %v975 = vmul.f32 %v959, 15.0
        %v976 = vmax.f32 %v960, 0.0
        %v977 = vmax.f32 %v961, 0.0
        %v978 = vmax.f32 %v962, 0.0
        %v979 = vmax.f32 %v963, 0.0
        %v980 = vmax.f32 %v964, 0.0
        %v981 = vmax.f32 %v965, 0.0
        %v982 = vmax.f32 %v966, 0.0
        %v983 = vmax.f32 %v967, 0.0
        %v984 = vmax.f32 %v968, 0.0
        %v985 = vmax.f32 %v969, 0.0
        %v986 = vmax.f32 %v970, 0.0
        %v987 = vmax.f32 %v971, 0.0
        %v988 = vmax.f32 %v972, 0.0
        %v989 = vmax.f32 %v973, 0.0
        %v990 = vmax.f32 %v974, 0.0
        %v991 = vmax.f32 %v975, 0.0
        %v992 = vmin.f32 %v976, 15.0
        %v993 = vmin.f32 %v977, 15.0
        %v994 = vmin.f32 %v978, 15.0
        %v995 = vmin.f32 %v979, 15.0
        %v996 = vmin.f32 %v980, 15.0
        %v997 = vmin.f32 %v981, 15.0
        %v998 = vmin.f32 %v982, 15.0
        %v999 = vmin.f32 %v983, 15.0
        %v1000 = vmin.f32 %v984, 15.0
        %v1001 = vmin.f32 %v985, 15.0
        %v1002 = vmin.f32 %v986, 15.0
        %v1003 = vmin.f32 %v987, 15.0
        %v1004 = vmin.f32 %v988, 15.0
        %v1005 = vmin.f32 %v989, 15.0
        %v1006 = vmin.f32 %v990, 15.0
        %v1007 = vmin.f32 %v991, 15.0
        %v1008 = vfloor.f32 %v992
        %v1009 = vfloor.f32 %v993
        %v1010 = vfloor.f32 %v994
        %v1011 = vfloor.f32 %v995
        %v1012 = vfloor.f32 %v996
        %v1013 = vfloor.f32 %v997
        %v1014 = vfloor.f32 %v998
        %v1015 = vfloor.f32 %v999
        %v1016 = vfloor.f32 %v1000
        %v1017 = vfloor.f32 %v1001
        %v1018 = vfloor.f32 %v1002
        %v1019 = vfloor.f32 %v1003
        %v1020 = vfloor.f32 %v1004
        %v1021 = vfloor.f32 %v1005
        %v1022 = vfloor.f32 %v1006
        %v1023 = vfloor.f32 %v1007
        %v1024 = vcvt.f32.s32.to.zero.pseudo %v1008
        %v1025 = vcvt.f32.s32.to.zero.pseudo %v1009
        %v1026 = vcvt.f32.s32.to.zero.pseudo %v1010
        %v1027 = vcvt.f32.s32.to.zero.pseudo %v1011
        %v1028 = vcvt.f32.s32.to.zero.pseudo %v1012
        %v1029 = vcvt.f32.s32.to.zero.pseudo %v1013
        %v1030 = vcvt.f32.s32.to.zero.pseudo %v1014
        %v1031 = vcvt.f32.s32.to.zero.pseudo %v1015
        %v1032 = vcvt.f32.s32.to.zero.pseudo %v1016
        %v1033 = vcvt.f32.s32.to.zero.pseudo %v1017
        %v1034 = vcvt.f32.s32.to.zero.pseudo %v1018
        %v1035 = vcvt.f32.s32.to.zero.pseudo %v1019
        %v1036 = vcvt.f32.s32.to.zero.pseudo %v1020
        %v1037 = vcvt.f32.s32.to.zero.pseudo %v1021
        %v1038 = vcvt.f32.s32.to.zero.pseudo %v1022
        %v1039 = vcvt.f32.s32.to.zero.pseudo %v1023
        %v1040 = vadd.s32 %v1024, 1
        %v1041 = vadd.s32 %v1025, 1
        %v1042 = vadd.s32 %v1026, 1
        %v1043 = vadd.s32 %v1027, 1
        %v1044 = vadd.s32 %v1028, 1
        %v1045 = vadd.s32 %v1029, 1
        %v1046 = vadd.s32 %v1030, 1
        %v1047 = vadd.s32 %v1031, 1
        %v1048 = vadd.s32 %v1032, 1
        %v1049 = vadd.s32 %v1033, 1
        %v1050 = vadd.s32 %v1034, 1
        %v1051 = vadd.s32 %v1035, 1
        %v1052 = vadd.s32 %v1036, 1
        %v1053 = vadd.s32 %v1037, 1
        %v1054 = vadd.s32 %v1038, 1
        %v1055 = vadd.s32 %v1039, 1
        %vm1056 = vcmp.lt.s32.totalorder %v1040, 15
        %v1057 = vsel %vm1056, %v1040, 15
        %vm1058 = vcmp.lt.s32.totalorder %v1041, 15
        %v1059 = vsel %vm1058, %v1041, 15
        %vm1060 = vcmp.lt.s32.totalorder %v1042, 15
        %v1061 = vsel %vm1060, %v1042, 15
        %vm1062 = vcmp.lt.s32.totalorder %v1043, 15
        %v1063 = vsel %vm1062, %v1043, 15
        %vm1064 = vcmp.lt.s32.totalorder %v1044, 15
        %v1065 = vsel %vm1064, %v1044, 15
        %vm1066 = vcmp.lt.s32.totalorder %v1045, 15
        %v1067 = vsel %vm1066, %v1045, 15
        %vm1068 = vcmp.lt.s32.totalorder %v1046, 15
        %v1069 = vsel %vm1068, %v1046, 15
        %vm1070 = vcmp.lt.s32.totalorder %v1047, 15
        %v1071 = vsel %vm1070, %v1047, 15
        %vm1072 = vcmp.lt.s32.totalorder %v1048, 15
        %v1073 = vsel %vm1072, %v1048, 15
        %vm1074 = vcmp.lt.s32.totalorder %v1049, 15
        %v1075 = vsel %vm1074, %v1049, 15
        %vm1076 = vcmp.lt.s32.totalorder %v1050, 15
        %v1077 = vsel %vm1076, %v1050, 15
        %vm1078 = vcmp.lt.s32.totalorder %v1051, 15
        %v1079 = vsel %vm1078, %v1051, 15
        %vm1080 = vcmp.lt.s32.totalorder %v1052, 15
        %v1081 = vsel %vm1080, %v1052, 15
        %vm1082 = vcmp.lt.s32.totalorder %v1053, 15
        %v1083 = vsel %vm1082, %v1053, 15
        %vm1084 = vcmp.lt.s32.totalorder %v1054, 15
        %v1085 = vsel %vm1084, %v1054, 15
        %vm1086 = vcmp.lt.s32.totalorder %v1055, 15
        %v1087 = vsel %vm1086, %v1055, 15
        %v1088 = vcvt.s32.f32 %v1024
        %v1089 = vcvt.s32.f32 %v1025
        %v1090 = vcvt.s32.f32 %v1026
        %v1091 = vcvt.s32.f32 %v1027
        %v1092 = vcvt.s32.f32 %v1028
        %v1093 = vcvt.s32.f32 %v1029
        %v1094 = vcvt.s32.f32 %v1030
        %v1095 = vcvt.s32.f32 %v1031
        %v1096 = vcvt.s32.f32 %v1032
        %v1097 = vcvt.s32.f32 %v1033
        %v1098 = vcvt.s32.f32 %v1034
        %v1099 = vcvt.s32.f32 %v1035
        %v1100 = vcvt.s32.f32 %v1036
        %v1101 = vcvt.s32.f32 %v1037
        %v1102 = vcvt.s32.f32 %v1038
        %v1103 = vcvt.s32.f32 %v1039
        %v1104 = vsub.f32 %v992, %v1088
        %v1105 = vsub.f32 %v993, %v1089
        %v1106 = vsub.f32 %v994, %v1090
        %v1107 = vsub.f32 %v995, %v1091
        %v1108 = vsub.f32 %v996, %v1092
        %v1109 = vsub.f32 %v997, %v1093
        %v1110 = vsub.f32 %v998, %v1094
        %v1111 = vsub.f32 %v999, %v1095
        %v1112 = vsub.f32 %v1000, %v1096
        %v1113 = vsub.f32 %v1001, %v1097
        %v1114 = vsub.f32 %v1002, %v1098
        %v1115 = vsub.f32 %v1003, %v1099
        %v1116 = vsub.f32 %v1004, %v1100
        %v1117 = vsub.f32 %v1005, %v1101
        %v1118 = vsub.f32 %v1006, %v1102
        %v1119 = vsub.f32 %v1007, %v1103
        %v1120 = vlaneseq
        %v1121 = vand.u32 %v1120, 127
        %1122 = vset.pattern.permute.xlu0 0
        %1123 = vperm.xlu0 %1122, %v1024
        %v1124 = vpop.permute.xlu0 %1123
        %1125 = vset.pattern.permute.xlu0 0
        %1126 = vperm.xlu0 %1125, %v1025
        %v1127 = vpop.permute.xlu0 %1126
        %1128 = vset.pattern.permute.xlu0 0
        %1129 = vperm.xlu0 %1128, %v1026
        %v1130 = vpop.permute.xlu0 %1129
        %1131 = vset.pattern.permute.xlu0 0
        %1132 = vperm.xlu0 %1131, %v1027
        %v1133 = vpop.permute.xlu0 %1132
        %1134 = vset.pattern.permute.xlu0 0
        %1135 = vperm.xlu0 %1134, %v1028
        %v1136 = vpop.permute.xlu0 %1135
        %1137 = vset.pattern.permute.xlu0 0
        %1138 = vperm.xlu0 %1137, %v1029
        %v1139 = vpop.permute.xlu0 %1138
        %1140 = vset.pattern.permute.xlu0 0
        %1141 = vperm.xlu0 %1140, %v1030
        %v1142 = vpop.permute.xlu0 %1141
        %1143 = vset.pattern.permute.xlu0 0
        %1144 = vperm.xlu0 %1143, %v1031
        %v1145 = vpop.permute.xlu0 %1144
        %1146 = vset.pattern.permute.xlu0 0
        %1147 = vperm.xlu0 %1146, %v1032
        %v1148 = vpop.permute.xlu0 %1147
        %1149 = vset.pattern.permute.xlu0 0
        %1150 = vperm.xlu0 %1149, %v1033
        %v1151 = vpop.permute.xlu0 %1150
        %1152 = vset.pattern.permute.xlu0 0
        %1153 = vperm.xlu0 %1152, %v1034
        %v1154 = vpop.permute.xlu0 %1153
        %1155 = vset.pattern.permute.xlu0 0
        %1156 = vperm.xlu0 %1155, %v1035
        %v1157 = vpop.permute.xlu0 %1156
        %1158 = vset.pattern.permute.xlu0 0
        %1159 = vperm.xlu0 %1158, %v1036
        %v1160 = vpop.permute.xlu0 %1159
        %1161 = vset.pattern.permute.xlu0 0
        %1162 = vperm.xlu0 %1161, %v1037
        %v1163 = vpop.permute.xlu0 %1162
        %1164 = vset.pattern.permute.xlu0 0
        %1165 = vperm.xlu0 %1164, %v1038
        %v1166 = vpop.permute.xlu0 %1165
        %1167 = vset.pattern.permute.xlu0 0
        %1168 = vperm.xlu0 %1167, %v1039
        %v1169 = vpop.permute.xlu0 %1168
        %vm1170 = vcmp.eq.s32.totalorder %v1121, %v1124
        %vm1171 = vcmp.eq.s32.totalorder %v1121, %v1127
        %vm1172 = vcmp.eq.s32.totalorder %v1121, %v1130
        %vm1173 = vcmp.eq.s32.totalorder %v1121, %v1133
        %vm1174 = vcmp.eq.s32.totalorder %v1121, %v1136
        %vm1175 = vcmp.eq.s32.totalorder %v1121, %v1139
        %vm1176 = vcmp.eq.s32.totalorder %v1121, %v1142
        %vm1177 = vcmp.eq.s32.totalorder %v1121, %v1145
        %vm1178 = vcmp.eq.s32.totalorder %v1121, %v1148
        %vm1179 = vcmp.eq.s32.totalorder %v1121, %v1151
        %vm1180 = vcmp.eq.s32.totalorder %v1121, %v1154
        %vm1181 = vcmp.eq.s32.totalorder %v1121, %v1157
        %vm1182 = vcmp.eq.s32.totalorder %v1121, %v1160
        %vm1183 = vcmp.eq.s32.totalorder %v1121, %v1163
        %vm1184 = vcmp.eq.s32.totalorder %v1121, %v1166
        %vm1185 = vcmp.eq.s32.totalorder %v1121, %v1169
        %v1186 = vsub.f32 1.0, %v1104
        %v1187 = vsub.f32 1.0, %v1105
        %v1188 = vsub.f32 1.0, %v1106
        %v1189 = vsub.f32 1.0, %v1107
        %v1190 = vsub.f32 1.0, %v1108
        %v1191 = vsub.f32 1.0, %v1109
        %v1192 = vsub.f32 1.0, %v1110
        %v1193 = vsub.f32 1.0, %v1111
        %v1194 = vsub.f32 1.0, %v1112
        %v1195 = vsub.f32 1.0, %v1113
        %v1196 = vsub.f32 1.0, %v1114
        %v1197 = vsub.f32 1.0, %v1115
        %v1198 = vsub.f32 1.0, %v1116
        %v1199 = vsub.f32 1.0, %v1117
        %v1200 = vsub.f32 1.0, %v1118
        %v1201 = vsub.f32 1.0, %v1119
        %1203 = vset.pattern.permute.xlu0 0
        %1204 = vperm.xlu0 %1203, %v1186
        %v1205 = vpop.permute.xlu0 %1204
        %1208 = vset.pattern.permute.xlu0 0
        %1209 = vperm.xlu0 %1208, %v1187
        %v1210 = vpop.permute.xlu0 %1209
        %1213 = vset.pattern.permute.xlu0 0
        %1214 = vperm.xlu0 %1213, %v1188
        %v1215 = vpop.permute.xlu0 %1214
        %1218 = vset.pattern.permute.xlu0 0
        %1219 = vperm.xlu0 %1218, %v1189
        %v1220 = vpop.permute.xlu0 %1219
        %1223 = vset.pattern.permute.xlu0 0
        %1224 = vperm.xlu0 %1223, %v1190
        %v1225 = vpop.permute.xlu0 %1224
        %1228 = vset.pattern.permute.xlu0 0
        %1229 = vperm.xlu0 %1228, %v1191
        %v1230 = vpop.permute.xlu0 %1229
        %1233 = vset.pattern.permute.xlu0 0
        %1234 = vperm.xlu0 %1233, %v1192
        %v1235 = vpop.permute.xlu0 %1234
        %1238 = vset.pattern.permute.xlu0 0
        %1239 = vperm.xlu0 %1238, %v1193
        %v1240 = vpop.permute.xlu0 %1239
        %1243 = vset.pattern.permute.xlu0 0
        %1244 = vperm.xlu0 %1243, %v1194
        %v1245 = vpop.permute.xlu0 %1244
        %1248 = vset.pattern.permute.xlu0 0
        %1249 = vperm.xlu0 %1248, %v1195
        %v1250 = vpop.permute.xlu0 %1249
        %1253 = vset.pattern.permute.xlu0 0
        %1254 = vperm.xlu0 %1253, %v1196
        %v1255 = vpop.permute.xlu0 %1254
        %1258 = vset.pattern.permute.xlu0 0
        %1259 = vperm.xlu0 %1258, %v1197
        %v1260 = vpop.permute.xlu0 %1259
        %1263 = vset.pattern.permute.xlu0 0
        %1264 = vperm.xlu0 %1263, %v1198
        %v1265 = vpop.permute.xlu0 %1264
        %1268 = vset.pattern.permute.xlu0 0
        %1269 = vperm.xlu0 %1268, %v1199
        %v1270 = vpop.permute.xlu0 %1269
        %1273 = vset.pattern.permute.xlu0 0
        %1274 = vperm.xlu0 %1273, %v1200
        %v1275 = vpop.permute.xlu0 %1274
        %1278 = vset.pattern.permute.xlu0 0
        %1279 = vperm.xlu0 %1278, %v1201
        %v1280 = vpop.permute.xlu0 %1279
        %v1282 = vsel %vm1170, %v1205, 0.0
        %v1283 = vsel %vm1171, %v1210, 0.0
        %v1284 = vsel %vm1172, %v1215, 0.0
        %v1285 = vsel %vm1173, %v1220, 0.0
        %v1286 = vsel %vm1174, %v1225, 0.0
        %v1287 = vsel %vm1175, %v1230, 0.0
        %v1288 = vsel %vm1176, %v1235, 0.0
        %v1289 = vsel %vm1177, %v1240, 0.0
        %v1290 = vsel %vm1178, %v1245, 0.0
        %v1291 = vsel %vm1179, %v1250, 0.0
        %v1292 = vsel %vm1180, %v1255, 0.0
        %v1293 = vsel %vm1181, %v1260, 0.0
        %v1294 = vsel %vm1182, %v1265, 0.0
        %v1295 = vsel %vm1183, %v1270, 0.0
        %v1296 = vsel %vm1184, %v1275, 0.0
        %v1297 = vsel %vm1185, %v1280, 0.0
        %1298 = vset.pattern.permute.xlu0 0
        %1299 = vperm.xlu0 %1298, %v1057
        %v1300 = vpop.permute.xlu0 %1299
        %1301 = vset.pattern.permute.xlu0 0
        %1302 = vperm.xlu0 %1301, %v1059
        %v1303 = vpop.permute.xlu0 %1302
        %1304 = vset.pattern.permute.xlu0 0
        %1305 = vperm.xlu0 %1304, %v1061
        %v1306 = vpop.permute.xlu0 %1305
        %1307 = vset.pattern.permute.xlu0 0
        %1308 = vperm.xlu0 %1307, %v1063
        %v1309 = vpop.permute.xlu0 %1308
        %1310 = vset.pattern.permute.xlu0 0
        %1311 = vperm.xlu0 %1310, %v1065
        %v1312 = vpop.permute.xlu0 %1311
        %1313 = vset.pattern.permute.xlu0 0
        %1314 = vperm.xlu0 %1313, %v1067
        %v1315 = vpop.permute.xlu0 %1314
        %1316 = vset.pattern.permute.xlu0 0
        %1317 = vperm.xlu0 %1316, %v1069
        %v1318 = vpop.permute.xlu0 %1317
        %1319 = vset.pattern.permute.xlu0 0
        %1320 = vperm.xlu0 %1319, %v1071
        %v1321 = vpop.permute.xlu0 %1320
        %1322 = vset.pattern.permute.xlu0 0
        %1323 = vperm.xlu0 %1322, %v1073
        %v1324 = vpop.permute.xlu0 %1323
        %1325 = vset.pattern.permute.xlu0 0
        %1326 = vperm.xlu0 %1325, %v1075
        %v1327 = vpop.permute.xlu0 %1326
        %1328 = vset.pattern.permute.xlu0 0
        %1329 = vperm.xlu0 %1328, %v1077
        %v1330 = vpop.permute.xlu0 %1329
        %1331 = vset.pattern.permute.xlu0 0
        %1332 = vperm.xlu0 %1331, %v1079
        %v1333 = vpop.permute.xlu0 %1332
        %1334 = vset.pattern.permute.xlu0 0
        %1335 = vperm.xlu0 %1334, %v1081
        %v1336 = vpop.permute.xlu0 %1335
        %1337 = vset.pattern.permute.xlu0 0
        %1338 = vperm.xlu0 %1337, %v1083
        %v1339 = vpop.permute.xlu0 %1338
        %1340 = vset.pattern.permute.xlu0 0
        %1341 = vperm.xlu0 %1340, %v1085
        %v1342 = vpop.permute.xlu0 %1341
        %1343 = vset.pattern.permute.xlu0 0
        %1344 = vperm.xlu0 %1343, %v1087
        %v1345 = vpop.permute.xlu0 %1344
        %vm1346 = vcmp.eq.s32.totalorder %v1121, %v1300
        %vm1347 = vcmp.eq.s32.totalorder %v1121, %v1303
        %vm1348 = vcmp.eq.s32.totalorder %v1121, %v1306
        %vm1349 = vcmp.eq.s32.totalorder %v1121, %v1309
        %vm1350 = vcmp.eq.s32.totalorder %v1121, %v1312
        %vm1351 = vcmp.eq.s32.totalorder %v1121, %v1315
        %vm1352 = vcmp.eq.s32.totalorder %v1121, %v1318
        %vm1353 = vcmp.eq.s32.totalorder %v1121, %v1321
        %vm1354 = vcmp.eq.s32.totalorder %v1121, %v1324
        %vm1355 = vcmp.eq.s32.totalorder %v1121, %v1327
        %vm1356 = vcmp.eq.s32.totalorder %v1121, %v1330
        %vm1357 = vcmp.eq.s32.totalorder %v1121, %v1333
        %vm1358 = vcmp.eq.s32.totalorder %v1121, %v1336
        %vm1359 = vcmp.eq.s32.totalorder %v1121, %v1339
        %vm1360 = vcmp.eq.s32.totalorder %v1121, %v1342
        %vm1361 = vcmp.eq.s32.totalorder %v1121, %v1345
        %1363 = vset.pattern.permute.xlu0 0
        %1364 = vperm.xlu0 %1363, %v1104
        %v1365 = vpop.permute.xlu0 %1364
        %1368 = vset.pattern.permute.xlu0 0
        %1369 = vperm.xlu0 %1368, %v1105
        %v1370 = vpop.permute.xlu0 %1369
        %1373 = vset.pattern.permute.xlu0 0
        %1374 = vperm.xlu0 %1373, %v1106
        %v1375 = vpop.permute.xlu0 %1374
        %1378 = vset.pattern.permute.xlu0 0
        %1379 = vperm.xlu0 %1378, %v1107
        %v1380 = vpop.permute.xlu0 %1379
        %1383 = vset.pattern.permute.xlu0 0
        %1384 = vperm.xlu0 %1383, %v1108
        %v1385 = vpop.permute.xlu0 %1384
        %1388 = vset.pattern.permute.xlu0 0
        %1389 = vperm.xlu0 %1388, %v1109
        %v1390 = vpop.permute.xlu0 %1389
        %1393 = vset.pattern.permute.xlu0 0
        %1394 = vperm.xlu0 %1393, %v1110
        %v1395 = vpop.permute.xlu0 %1394
        %1398 = vset.pattern.permute.xlu0 0
        %1399 = vperm.xlu0 %1398, %v1111
        %v1400 = vpop.permute.xlu0 %1399
        %1403 = vset.pattern.permute.xlu0 0
        %1404 = vperm.xlu0 %1403, %v1112
        %v1405 = vpop.permute.xlu0 %1404
        %1408 = vset.pattern.permute.xlu0 0
        %1409 = vperm.xlu0 %1408, %v1113
        %v1410 = vpop.permute.xlu0 %1409
        %1413 = vset.pattern.permute.xlu0 0
        %1414 = vperm.xlu0 %1413, %v1114
        %v1415 = vpop.permute.xlu0 %1414
        %1418 = vset.pattern.permute.xlu0 0
        %1419 = vperm.xlu0 %1418, %v1115
        %v1420 = vpop.permute.xlu0 %1419
        %1423 = vset.pattern.permute.xlu0 0
        %1424 = vperm.xlu0 %1423, %v1116
        %v1425 = vpop.permute.xlu0 %1424
        %1428 = vset.pattern.permute.xlu0 0
        %1429 = vperm.xlu0 %1428, %v1117
        %v1430 = vpop.permute.xlu0 %1429
        %1433 = vset.pattern.permute.xlu0 0
        %1434 = vperm.xlu0 %1433, %v1118
        %v1435 = vpop.permute.xlu0 %1434
        %1438 = vset.pattern.permute.xlu0 0
        %1439 = vperm.xlu0 %1438, %v1119
        %v1440 = vpop.permute.xlu0 %1439
        %v1442 = vsel %vm1346, %v1365, 0.0
        %v1443 = vsel %vm1347, %v1370, 0.0
        %v1444 = vsel %vm1348, %v1375, 0.0
        %v1445 = vsel %vm1349, %v1380, 0.0
        %v1446 = vsel %vm1350, %v1385, 0.0
        %v1447 = vsel %vm1351, %v1390, 0.0
        %v1448 = vsel %vm1352, %v1395, 0.0
        %v1449 = vsel %vm1353, %v1400, 0.0
        %v1450 = vsel %vm1354, %v1405, 0.0
        %v1451 = vsel %vm1355, %v1410, 0.0
        %v1452 = vsel %vm1356, %v1415, 0.0
        %v1453 = vsel %vm1357, %v1420, 0.0
        %v1454 = vsel %vm1358, %v1425, 0.0
        %v1455 = vsel %vm1359, %v1430, 0.0
        %v1456 = vsel %vm1360, %v1435, 0.0
        %v1457 = vsel %vm1361, %v1440, 0.0
        %v1458 = vadd.f32 %v1282, %v1442
        %v1459 = vadd.f32 %v1283, %v1443
        %v1460 = vadd.f32 %v1284, %v1444
        %v1461 = vadd.f32 %v1285, %v1445
        %v1462 = vadd.f32 %v1286, %v1446
        %v1463 = vadd.f32 %v1287, %v1447
        %v1464 = vadd.f32 %v1288, %v1448
        %v1465 = vadd.f32 %v1289, %v1449
        %v1466 = vadd.f32 %v1290, %v1450
        %v1467 = vadd.f32 %v1291, %v1451
        %v1468 = vadd.f32 %v1292, %v1452
        %v1469 = vadd.f32 %v1293, %v1453
        %v1470 = vadd.f32 %v1294, %v1454
        %v1471 = vadd.f32 %v1295, %v1455
        %v1472 = vadd.f32 %v1296, %v1456
        %v1473 = vadd.f32 %v1297, %v1457
        %v1474 = vld [vmem:[#allocation2] sm:$0xff]
        %v1475 = vld [vmem:[#allocation2 + $0x8] sm:$0xff]
        %vm1476 = vcmask 130048
        %v1478 = vsel %vm1476, %v1458, 0
        %v1481 = vsel %vm1476, %v1459, 0
        %v1484 = vsel %vm1476, %v1460, 0
        %v1487 = vsel %vm1476, %v1461, 0
        %v1490 = vsel %vm1476, %v1462, 0
        %v1493 = vsel %vm1476, %v1463, 0
        %v1496 = vsel %vm1476, %v1464, 0
        %v1499 = vsel %vm1476, %v1465, 0
        %v1502 = vsel %vm1476, %v1466, 0
        %v1505 = vsel %vm1476, %v1467, 0
        %v1508 = vsel %vm1476, %v1468, 0
        %v1511 = vsel %vm1476, %v1469, 0
        %v1514 = vsel %vm1476, %v1470, 0
        %v1517 = vsel %vm1476, %v1471, 0
        %v1520 = vsel %vm1476, %v1472, 0
        %v1523 = vsel %vm1476, %v1473, 0
        %1525 = vmatpush.msra.mxu0 0.0
        %1526 = vmatpush.msra.mxu0 0.0
        %1527 = vmatpush.msra.mxu0 0.0
        %1528 = vmatpush.msra.mxu0 0.0
        %1529 = vmatpush.msra.mxu0 0.0
        %1530 = vmatpush.msra.mxu0 0.0
        %1531 = vmatpush.msra.mxu0 0.0
        %1532 = vmatpush.msra.mxu0 0.0
        %1533 = vmatpush.msra.mxu0 0.0
        %1534 = vmatpush.msra.mxu0 0.0
        %1535 = vmatpush.msra.mxu0 0.0
        %1536 = vmatpush.msra.mxu0 0.0
        %1537 = vmatpush.msra.mxu0 0.0
        %1538 = vmatpush.msra.mxu0 0.0
        %1539 = vmatpush.msra.mxu0 %v1475
        %1540 = vmatpush.msra.mxu0 %v1474
        %1541 = vmatmul.f32.gmra.mxu0 %v1478
        %v1542 = vpop.f32.mrf.mxu0
        %v1543 = vadd.f32 0.0, %v1542
        %1544 = vmatmul.f32.gmra.mxu0 %v1481
        %v1545 = vpop.f32.mrf.mxu0
        %v1546 = vadd.f32 0.0, %v1545
        %1547 = vmatmul.f32.gmra.mxu0 %v1484
        %v1548 = vpop.f32.mrf.mxu0
        %v1549 = vadd.f32 0.0, %v1548
        %1550 = vmatmul.f32.gmra.mxu0 %v1487
        %v1551 = vpop.f32.mrf.mxu0
        %v1552 = vadd.f32 0.0, %v1551
        %1553 = vmatmul.f32.gmra.mxu0 %v1490
        %v1554 = vpop.f32.mrf.mxu0
        %v1555 = vadd.f32 0.0, %v1554
        %1556 = vmatmul.f32.gmra.mxu0 %v1493
        %v1557 = vpop.f32.mrf.mxu0
        %v1558 = vadd.f32 0.0, %v1557
        %1559 = vmatmul.f32.gmra.mxu0 %v1496
        %v1560 = vpop.f32.mrf.mxu0
        %v1561 = vadd.f32 0.0, %v1560
        %1562 = vmatmul.f32.gmra.mxu0 %v1499
        %v1563 = vpop.f32.mrf.mxu0
        %v1564 = vadd.f32 0.0, %v1563
        %1565 = vmatmul.f32.gmra.mxu0 %v1502
        %v1566 = vpop.f32.mrf.mxu0
        %v1567 = vadd.f32 0.0, %v1566
        %1568 = vmatmul.f32.gmra.mxu0 %v1505
        %v1569 = vpop.f32.mrf.mxu0
        %v1570 = vadd.f32 0.0, %v1569
        %1571 = vmatmul.f32.gmra.mxu0 %v1508
        %v1572 = vpop.f32.mrf.mxu0
        %v1573 = vadd.f32 0.0, %v1572
        %1574 = vmatmul.f32.gmra.mxu0 %v1511
        %v1575 = vpop.f32.mrf.mxu0
        %v1576 = vadd.f32 0.0, %v1575
        %1577 = vmatmul.f32.gmra.mxu0 %v1514
        %v1578 = vpop.f32.mrf.mxu0
        %v1579 = vadd.f32 0.0, %v1578
        %1580 = vmatmul.f32.gmra.mxu0 %v1517
        %v1581 = vpop.f32.mrf.mxu0
        %v1582 = vadd.f32 0.0, %v1581
        %1583 = vmatmul.f32.gmra.mxu0 %v1520
        %v1584 = vpop.f32.mrf.mxu0
        %v1585 = vadd.f32 0.0, %v1584
        %1586 = vmatmul.f32.gmra.mxu0 %v1523
        %v1587 = vpop.f32.mrf.mxu0
        %v1588 = vadd.f32 0.0, %v1587
        %1589 = vdwg.mxu0
        %1590 = vst [vmem:[%s220] sm:$0xff] %v1543
        %1591 = vst [vmem:[%s220 + $0x18] sm:$0xff] %v1546
        %1592 = vst [vmem:[%s220 + $0x30] sm:$0xff] %v1549
        %1593 = vst [vmem:[%s220 + $0x48] sm:$0xff] %v1552
        %1594 = vst [vmem:[%s220 + $0x60] sm:$0xff] %v1555
        %1595 = vst [vmem:[%s220 + $0x78] sm:$0xff] %v1558
        %1596 = vst [vmem:[%s220 + $0x90] sm:$0xff] %v1561
        %1597 = vst [vmem:[%s220 + $0xa8] sm:$0xff] %v1564
        %1598 = vst [vmem:[%s220 + $0xc0] sm:$0xff] %v1567
        %1599 = vst [vmem:[%s220 + $0xd8] sm:$0xff] %v1570
        %1600 = vst [vmem:[%s220 + $0xf0] sm:$0xff] %v1573
        %1601 = vst [vmem:[%s220 + $0x108] sm:$0xff] %v1576
        %1602 = vst [vmem:[%s220 + $0x120] sm:$0xff] %v1579
        %1603 = vst [vmem:[%s220 + $0x138] sm:$0xff] %v1582
        %1604 = vst [vmem:[%s220 + $0x150] sm:$0xff] %v1585
        %1605 = vst [vmem:[%s220 + $0x168] sm:$0xff] %v1588
        %1606 = vset.pattern.permute.xlu0 1
        %1607 = vperm.xlu0 %1606, %v1024
        %v1608 = vpop.permute.xlu0 %1607
        %1609 = vset.pattern.permute.xlu0 1
        %1610 = vperm.xlu0 %1609, %v1025
        %v1611 = vpop.permute.xlu0 %1610
        %1612 = vset.pattern.permute.xlu0 1
        %1613 = vperm.xlu0 %1612, %v1026
        %v1614 = vpop.permute.xlu0 %1613
        %1615 = vset.pattern.permute.xlu0 1
        %1616 = vperm.xlu0 %1615, %v1027
        %v1617 = vpop.permute.xlu0 %1616
        %1618 = vset.pattern.permute.xlu0 1
        %1619 = vperm.xlu0 %1618, %v1028
        %v1620 = vpop.permute.xlu0 %1619
        %1621 = vset.pattern.permute.xlu0 1
        %1622 = vperm.xlu0 %1621, %v1029
        %v1623 = vpop.permute.xlu0 %1622
        %1624 = vset.pattern.permute.xlu0 1
        %1625 = vperm.xlu0 %1624, %v1030
        %v1626 = vpop.permute.xlu0 %1625
        %1627 = vset.pattern.permute.xlu0 1
        %1628 = vperm.xlu0 %1627, %v1031
        %v1629 = vpop.permute.xlu0 %1628
        %1630 = vset.pattern.permute.xlu0 1
        %1631 = vperm.xlu0 %1630, %v1032
        %v1632 = vpop.permute.xlu0 %1631
        %1633 = vset.pattern.permute.xlu0 1
        %1634 = vperm.xlu0 %1633, %v1033
        %v1635 = vpop.permute.xlu0 %1634
        %1636 = vset.pattern.permute.xlu0 1
        %1637 = vperm.xlu0 %1636, %v1034
        %v1638 = vpop.permute.xlu0 %1637
        %1639 = vset.pattern.permute.xlu0 1
        %1640 = vperm.xlu0 %1639, %v1035
        %v1641 = vpop.permute.xlu0 %1640
        %1642 = vset.pattern.permute.xlu0 1
        %1643 = vperm.xlu0 %1642, %v1036
        %v1644 = vpop.permute.xlu0 %1643
        %1645 = vset.pattern.permute.xlu0 1
        %1646 = vperm.xlu0 %1645, %v1037
        %v1647 = vpop.permute.xlu0 %1646
        %1648 = vset.pattern.permute.xlu0 1
        %1649 = vperm.xlu0 %1648, %v1038
        %v1650 = vpop.permute.xlu0 %1649
        %1651 = vset.pattern.permute.xlu0 1
        %1652 = vperm.xlu0 %1651, %v1039
        %v1653 = vpop.permute.xlu0 %1652
        %vm1654 = vcmp.eq.s32.totalorder %v1121, %v1608
        %vm1655 = vcmp.eq.s32.totalorder %v1121, %v1611
        %vm1656 = vcmp.eq.s32.totalorder %v1121, %v1614
        %vm1657 = vcmp.eq.s32.totalorder %v1121, %v1617
        %vm1658 = vcmp.eq.s32.totalorder %v1121, %v1620
        %vm1659 = vcmp.eq.s32.totalorder %v1121, %v1623
        %vm1660 = vcmp.eq.s32.totalorder %v1121, %v1626
        %vm1661 = vcmp.eq.s32.totalorder %v1121, %v1629
        %vm1662 = vcmp.eq.s32.totalorder %v1121, %v1632
        %vm1663 = vcmp.eq.s32.totalorder %v1121, %v1635
        %vm1664 = vcmp.eq.s32.totalorder %v1121, %v1638
        %vm1665 = vcmp.eq.s32.totalorder %v1121, %v1641
        %vm1666 = vcmp.eq.s32.totalorder %v1121, %v1644
        %vm1667 = vcmp.eq.s32.totalorder %v1121, %v1647
        %vm1668 = vcmp.eq.s32.totalorder %v1121, %v1650
        %vm1669 = vcmp.eq.s32.totalorder %v1121, %v1653
        %1670 = vset.pattern.permute.xlu0 1
        %1671 = vperm.xlu0 %1670, %v1186
        %v1672 = vpop.permute.xlu0 %1671
        %1674 = vset.pattern.permute.xlu0 1
        %1675 = vperm.xlu0 %1674, %v1187
        %v1676 = vpop.permute.xlu0 %1675
        %1678 = vset.pattern.permute.xlu0 1
        %1679 = vperm.xlu0 %1678, %v1188
        %v1680 = vpop.permute.xlu0 %1679
        %1682 = vset.pattern.permute.xlu0 1
        %1683 = vperm.xlu0 %1682, %v1189
        %v1684 = vpop.permute.xlu0 %1683
        %1686 = vset.pattern.permute.xlu0 1
        %1687 = vperm.xlu0 %1686, %v1190
        %v1688 = vpop.permute.xlu0 %1687
        %1690 = vset.pattern.permute.xlu0 1
        %1691 = vperm.xlu0 %1690, %v1191
        %v1692 = vpop.permute.xlu0 %1691
        %1694 = vset.pattern.permute.xlu0 1
        %1695 = vperm.xlu0 %1694, %v1192
        %v1696 = vpop.permute.xlu0 %1695
        %1698 = vset.pattern.permute.xlu0 1
        %1699 = vperm.xlu0 %1698, %v1193
        %v1700 = vpop.permute.xlu0 %1699
        %1702 = vset.pattern.permute.xlu0 1
        %1703 = vperm.xlu0 %1702, %v1194
        %v1704 = vpop.permute.xlu0 %1703
        %1706 = vset.pattern.permute.xlu0 1
        %1707 = vperm.xlu0 %1706, %v1195
        %v1708 = vpop.permute.xlu0 %1707
        %1710 = vset.pattern.permute.xlu0 1
        %1711 = vperm.xlu0 %1710, %v1196
        %v1712 = vpop.permute.xlu0 %1711
        %1714 = vset.pattern.permute.xlu0 1
        %1715 = vperm.xlu0 %1714, %v1197
        %v1716 = vpop.permute.xlu0 %1715
        %1718 = vset.pattern.permute.xlu0 1
        %1719 = vperm.xlu0 %1718, %v1198
        %v1720 = vpop.permute.xlu0 %1719
        %1722 = vset.pattern.permute.xlu0 1
        %1723 = vperm.xlu0 %1722, %v1199
        %v1724 = vpop.permute.xlu0 %1723
        %1726 = vset.pattern.permute.xlu0 1
        %1727 = vperm.xlu0 %1726, %v1200
        %v1728 = vpop.permute.xlu0 %1727
        %1730 = vset.pattern.permute.xlu0 1
        %1731 = vperm.xlu0 %1730, %v1201
        %v1732 = vpop.permute.xlu0 %1731
        %v1734 = vsel %vm1654, %v1672, 0.0
        %v1735 = vsel %vm1655, %v1676, 0.0
        %v1736 = vsel %vm1656, %v1680, 0.0
        %v1737 = vsel %vm1657, %v1684, 0.0
        %v1738 = vsel %vm1658, %v1688, 0.0
        %v1739 = vsel %vm1659, %v1692, 0.0
        %v1740 = vsel %vm1660, %v1696, 0.0
        %v1741 = vsel %vm1661, %v1700, 0.0
        %v1742 = vsel %vm1662, %v1704, 0.0
        %v1743 = vsel %vm1663, %v1708, 0.0
        %v1744 = vsel %vm1664, %v1712, 0.0
        %v1745 = vsel %vm1665, %v1716, 0.0
        %v1746 = vsel %vm1666, %v1720, 0.0
        %v1747 = vsel %vm1667, %v1724, 0.0
        %v1748 = vsel %vm1668, %v1728, 0.0
        %v1749 = vsel %vm1669, %v1732, 0.0
        %1750 = vset.pattern.permute.xlu0 1
        %1751 = vperm.xlu0 %1750, %v1057
        %v1752 = vpop.permute.xlu0 %1751
        %1753 = vset.pattern.permute.xlu0 1
        %1754 = vperm.xlu0 %1753, %v1059
        %v1755 = vpop.permute.xlu0 %1754
        %1756 = vset.pattern.permute.xlu0 1
        %1757 = vperm.xlu0 %1756, %v1061
        %v1758 = vpop.permute.xlu0 %1757
        %1759 = vset.pattern.permute.xlu0 1
        %1760 = vperm.xlu0 %1759, %v1063
        %v1761 = vpop.permute.xlu0 %1760
        %1762 = vset.pattern.permute.xlu0 1
        %1763 = vperm.xlu0 %1762, %v1065
        %v1764 = vpop.permute.xlu0 %1763
        %1765 = vset.pattern.permute.xlu0 1
        %1766 = vperm.xlu0 %1765, %v1067
        %v1767 = vpop.permute.xlu0 %1766
        %1768 = vset.pattern.permute.xlu0 1
        %1769 = vperm.xlu0 %1768, %v1069
        %v1770 = vpop.permute.xlu0 %1769
        %1771 = vset.pattern.permute.xlu0 1
        %1772 = vperm.xlu0 %1771, %v1071
        %v1773 = vpop.permute.xlu0 %1772
        %1774 = vset.pattern.permute.xlu0 1
        %1775 = vperm.xlu0 %1774, %v1073
        %v1776 = vpop.permute.xlu0 %1775
        %1777 = vset.pattern.permute.xlu0 1
        %1778 = vperm.xlu0 %1777, %v1075
        %v1779 = vpop.permute.xlu0 %1778
        %1780 = vset.pattern.permute.xlu0 1
        %1781 = vperm.xlu0 %1780, %v1077
        %v1782 = vpop.permute.xlu0 %1781
        %1783 = vset.pattern.permute.xlu0 1
        %1784 = vperm.xlu0 %1783, %v1079
        %v1785 = vpop.permute.xlu0 %1784
        %1786 = vset.pattern.permute.xlu0 1
        %1787 = vperm.xlu0 %1786, %v1081
        %v1788 = vpop.permute.xlu0 %1787
        %1789 = vset.pattern.permute.xlu0 1
        %1790 = vperm.xlu0 %1789, %v1083
        %v1791 = vpop.permute.xlu0 %1790
        %1792 = vset.pattern.permute.xlu0 1
        %1793 = vperm.xlu0 %1792, %v1085
        %v1794 = vpop.permute.xlu0 %1793
        %1795 = vset.pattern.permute.xlu0 1
        %1796 = vperm.xlu0 %1795, %v1087
        %v1797 = vpop.permute.xlu0 %1796
        %vm1798 = vcmp.eq.s32.totalorder %v1121, %v1752
        %vm1799 = vcmp.eq.s32.totalorder %v1121, %v1755
        %vm1800 = vcmp.eq.s32.totalorder %v1121, %v1758
        %vm1801 = vcmp.eq.s32.totalorder %v1121, %v1761
        %vm1802 = vcmp.eq.s32.totalorder %v1121, %v1764
        %vm1803 = vcmp.eq.s32.totalorder %v1121, %v1767
        %vm1804 = vcmp.eq.s32.totalorder %v1121, %v1770
        %vm1805 = vcmp.eq.s32.totalorder %v1121, %v1773
        %vm1806 = vcmp.eq.s32.totalorder %v1121, %v1776
        %vm1807 = vcmp.eq.s32.totalorder %v1121, %v1779
        %vm1808 = vcmp.eq.s32.totalorder %v1121, %v1782
        %vm1809 = vcmp.eq.s32.totalorder %v1121, %v1785
        %vm1810 = vcmp.eq.s32.totalorder %v1121, %v1788
        %vm1811 = vcmp.eq.s32.totalorder %v1121, %v1791
        %vm1812 = vcmp.eq.s32.totalorder %v1121, %v1794
        %vm1813 = vcmp.eq.s32.totalorder %v1121, %v1797
        %1814 = vset.pattern.permute.xlu0 1
        %1815 = vperm.xlu0 %1814, %v1104
        %v1816 = vpop.permute.xlu0 %1815
        %1818 = vset.pattern.permute.xlu0 1
        %1819 = vperm.xlu0 %1818, %v1105
        %v1820 = vpop.permute.xlu0 %1819
        %1822 = vset.pattern.permute.xlu0 1
        %1823 = vperm.xlu0 %1822, %v1106
        %v1824 = vpop.permute.xlu0 %1823
        %1826 = vset.pattern.permute.xlu0 1
        %1827 = vperm.xlu0 %1826, %v1107
        %v1828 = vpop.permute.xlu0 %1827
        %1830 = vset.pattern.permute.xlu0 1
        %1831 = vperm.xlu0 %1830, %v1108
        %v1832 = vpop.permute.xlu0 %1831
        %1834 = vset.pattern.permute.xlu0 1
        %1835 = vperm.xlu0 %1834, %v1109
        %v1836 = vpop.permute.xlu0 %1835
        %1838 = vset.pattern.permute.xlu0 1
        %1839 = vperm.xlu0 %1838, %v1110
        %v1840 = vpop.permute.xlu0 %1839
        %1842 = vset.pattern.permute.xlu0 1
        %1843 = vperm.xlu0 %1842, %v1111
        %v1844 = vpop.permute.xlu0 %1843
        %1846 = vset.pattern.permute.xlu0 1
        %1847 = vperm.xlu0 %1846, %v1112
        %v1848 = vpop.permute.xlu0 %1847
        %1850 = vset.pattern.permute.xlu0 1
        %1851 = vperm.xlu0 %1850, %v1113
        %v1852 = vpop.permute.xlu0 %1851
        %1854 = vset.pattern.permute.xlu0 1
        %1855 = vperm.xlu0 %1854, %v1114
        %v1856 = vpop.permute.xlu0 %1855
        %1858 = vset.pattern.permute.xlu0 1
        %1859 = vperm.xlu0 %1858, %v1115
        %v1860 = vpop.permute.xlu0 %1859
        %1862 = vset.pattern.permute.xlu0 1
        %1863 = vperm.xlu0 %1862, %v1116
        %v1864 = vpop.permute.xlu0 %1863
        %1866 = vset.pattern.permute.xlu0 1
        %1867 = vperm.xlu0 %1866, %v1117
        %v1868 = vpop.permute.xlu0 %1867
        %1870 = vset.pattern.permute.xlu0 1
        %1871 = vperm.xlu0 %1870, %v1118
        %v1872 = vpop.permute.xlu0 %1871
        %1874 = vset.pattern.permute.xlu0 1
        %1875 = vperm.xlu0 %1874, %v1119
        %v1876 = vpop.permute.xlu0 %1875
        %v1878 = vsel %vm1798, %v1816, 0.0
        %v1879 = vsel %vm1799, %v1820, 0.0
        %v1880 = vsel %vm1800, %v1824, 0.0
        %v1881 = vsel %vm1801, %v1828, 0.0
        %v1882 = vsel %vm1802, %v1832, 0.0
        %v1883 = vsel %vm1803, %v1836, 0.0
        %v1884 = vsel %vm1804, %v1840, 0.0
        %v1885 = vsel %vm1805, %v1844, 0.0
        %v1886 = vsel %vm1806, %v1848, 0.0
        %v1887 = vsel %vm1807, %v1852, 0.0
        %v1888 = vsel %vm1808, %v1856, 0.0
        %v1889 = vsel %vm1809, %v1860, 0.0
        %v1890 = vsel %vm1810, %v1864, 0.0
        %v1891 = vsel %vm1811, %v1868, 0.0
        %v1892 = vsel %vm1812, %v1872, 0.0
        %v1893 = vsel %vm1813, %v1876, 0.0
        %v1894 = vadd.f32 %v1734, %v1878
        %v1895 = vadd.f32 %v1735, %v1879
        %v1896 = vadd.f32 %v1736, %v1880
        %v1897 = vadd.f32 %v1737, %v1881
        %v1898 = vadd.f32 %v1738, %v1882
        %v1899 = vadd.f32 %v1739, %v1883
        %v1900 = vadd.f32 %v1740, %v1884
        %v1901 = vadd.f32 %v1741, %v1885
        %v1902 = vadd.f32 %v1742, %v1886
        %v1903 = vadd.f32 %v1743, %v1887
        %v1904 = vadd.f32 %v1744, %v1888
        %v1905 = vadd.f32 %v1745, %v1889
        %v1906 = vadd.f32 %v1746, %v1890
        %v1907 = vadd.f32 %v1747, %v1891
        %v1908 = vadd.f32 %v1748, %v1892
        %v1909 = vadd.f32 %v1749, %v1893
        %v1910 = vld [vmem:[#allocation2 + $0x10] sm:$0xff]
        %v1911 = vld [vmem:[#allocation2 + $0x18] sm:$0xff]
        %v1913 = vsel %vm1476, %v1894, 0
        %v1916 = vsel %vm1476, %v1895, 0
        %v1919 = vsel %vm1476, %v1896, 0
        %v1922 = vsel %vm1476, %v1897, 0
        %v1925 = vsel %vm1476, %v1898, 0
        %v1928 = vsel %vm1476, %v1899, 0
        %v1931 = vsel %vm1476, %v1900, 0
        %v1934 = vsel %vm1476, %v1901, 0
        %v1937 = vsel %vm1476, %v1902, 0
        %v1940 = vsel %vm1476, %v1903, 0
        %v1943 = vsel %vm1476, %v1904, 0
        %v1946 = vsel %vm1476, %v1905, 0
        %v1949 = vsel %vm1476, %v1906, 0
        %v1952 = vsel %vm1476, %v1907, 0
        %v1955 = vsel %vm1476, %v1908, 0
        %v1958 = vsel %vm1476, %v1909, 0
        %1960 = vmatpush.msra.mxu0 0.0
        %1961 = vmatpush.msra.mxu0 0.0
        %1962 = vmatpush.msra.mxu0 0.0
        %1963 = vmatpush.msra.mxu0 0.0
        %1964 = vmatpush.msra.mxu0 0.0
        %1965 = vmatpush.msra.mxu0 0.0
        %1966 = vmatpush.msra.mxu0 0.0
        %1967 = vmatpush.msra.mxu0 0.0
        %1968 = vmatpush.msra.mxu0 0.0
        %1969 = vmatpush.msra.mxu0 0.0
        %1970 = vmatpush.msra.mxu0 0.0
        %1971 = vmatpush.msra.mxu0 0.0
        %1972 = vmatpush.msra.mxu0 0.0
        %1973 = vmatpush.msra.mxu0 0.0
        %1974 = vmatpush.msra.mxu0 %v1911
        %1975 = vmatpush.msra.mxu0 %v1910
        %1976 = vmatmul.f32.gmra.mxu0 %v1913
        %v1977 = vpop.f32.mrf.mxu0
        %v1978 = vadd.f32 0.0, %v1977
        %1979 = vmatmul.f32.gmra.mxu0 %v1916
        %v1980 = vpop.f32.mrf.mxu0
        %v1981 = vadd.f32 0.0, %v1980
        %1982 = vmatmul.f32.gmra.mxu0 %v1919
        %v1983 = vpop.f32.mrf.mxu0
        %v1984 = vadd.f32 0.0, %v1983
        %1985 = vmatmul.f32.gmra.mxu0 %v1922
        %v1986 = vpop.f32.mrf.mxu0
        %v1987 = vadd.f32 0.0, %v1986
        %1988 = vmatmul.f32.gmra.mxu0 %v1925
        %v1989 = vpop.f32.mrf.mxu0
        %v1990 = vadd.f32 0.0, %v1989
        %1991 = vmatmul.f32.gmra.mxu0 %v1928
        %v1992 = vpop.f32.mrf.mxu0
        %v1993 = vadd.f32 0.0, %v1992
        %1994 = vmatmul.f32.gmra.mxu0 %v1931
        %v1995 = vpop.f32.mrf.mxu0
        %v1996 = vadd.f32 0.0, %v1995
        %1997 = vmatmul.f32.gmra.mxu0 %v1934
        %v1998 = vpop.f32.mrf.mxu0
        %v1999 = vadd.f32 0.0, %v1998
        %2000 = vmatmul.f32.gmra.mxu0 %v1937
        %v2001 = vpop.f32.mrf.mxu0
        %v2002 = vadd.f32 0.0, %v2001
        %2003 = vmatmul.f32.gmra.mxu0 %v1940
        %v2004 = vpop.f32.mrf.mxu0
        %v2005 = vadd.f32 0.0, %v2004
        %2006 = vmatmul.f32.gmra.mxu0 %v1943
        %v2007 = vpop.f32.mrf.mxu0
        %v2008 = vadd.f32 0.0, %v2007
        %2009 = vmatmul.f32.gmra.mxu0 %v1946
        %v2010 = vpop.f32.mrf.mxu0
        %v2011 = vadd.f32 0.0, %v2010
        %2012 = vmatmul.f32.gmra.mxu0 %v1949
        %v2013 = vpop.f32.mrf.mxu0
        %v2014 = vadd.f32 0.0, %v2013
        %2015 = vmatmul.f32.gmra.mxu0 %v1952
        %v2016 = vpop.f32.mrf.mxu0
        %v2017 = vadd.f32 0.0, %v2016
        %2018 = vmatmul.f32.gmra.mxu0 %v1955
        %v2019 = vpop.f32.mrf.mxu0
        %v2020 = vadd.f32 0.0, %v2019
        %2021 = vmatmul.f32.gmra.mxu0 %v1958
        %v2022 = vpop.f32.mrf.mxu0
        %v2023 = vadd.f32 0.0, %v2022
        %2024 = vdwg.mxu0
        %2025 = vst [vmem:[%s220 + $0x8] sm:$0xff] %v1978
        %2026 = vst [vmem:[%s220 + $0x20] sm:$0xff] %v1981
        %2027 = vst [vmem:[%s220 + $0x38] sm:$0xff] %v1984
        %2028 = vst [vmem:[%s220 + $0x50] sm:$0xff] %v1987
        %2029 = vst [vmem:[%s220 + $0x68] sm:$0xff] %v1990
        %2030 = vst [vmem:[%s220 + $0x80] sm:$0xff] %v1993
        %2031 = vst [vmem:[%s220 + $0x98] sm:$0xff] %v1996
        %2032 = vst [vmem:[%s220 + $0xb0] sm:$0xff] %v1999
        %2033 = vst [vmem:[%s220 + $0xc8] sm:$0xff] %v2002
        %2034 = vst [vmem:[%s220 + $0xe0] sm:$0xff] %v2005
        %2035 = vst [vmem:[%s220 + $0xf8] sm:$0xff] %v2008
        %2036 = vst [vmem:[%s220 + $0x110] sm:$0xff] %v2011
        %2037 = vst [vmem:[%s220 + $0x128] sm:$0xff] %v2014
        %2038 = vst [vmem:[%s220 + $0x140] sm:$0xff] %v2017
        %2039 = vst [vmem:[%s220 + $0x158] sm:$0xff] %v2020
        %2040 = vst [vmem:[%s220 + $0x170] sm:$0xff] %v2023
        %2041 = vset.pattern.permute.xlu0 2
        %2042 = vperm.xlu0 %2041, %v1024
        %v2043 = vpop.permute.xlu0 %2042
        %2044 = vset.pattern.permute.xlu0 2
        %2045 = vperm.xlu0 %2044, %v1025
        %v2046 = vpop.permute.xlu0 %2045
        %2047 = vset.pattern.permute.xlu0 2
        %2048 = vperm.xlu0 %2047, %v1026
        %v2049 = vpop.permute.xlu0 %2048
        %2050 = vset.pattern.permute.xlu0 2
        %2051 = vperm.xlu0 %2050, %v1027
        %v2052 = vpop.permute.xlu0 %2051
        %2053 = vset.pattern.permute.xlu0 2
        %2054 = vperm.xlu0 %2053, %v1028
        %v2055 = vpop.permute.xlu0 %2054
        %2056 = vset.pattern.permute.xlu0 2
        %2057 = vperm.xlu0 %2056, %v1029
        %v2058 = vpop.permute.xlu0 %2057
        %2059 = vset.pattern.permute.xlu0 2
        %2060 = vperm.xlu0 %2059, %v1030
        %v2061 = vpop.permute.xlu0 %2060
        %2062 = vset.pattern.permute.xlu0 2
        %2063 = vperm.xlu0 %2062, %v1031
        %v2064 = vpop.permute.xlu0 %2063
        %2065 = vset.pattern.permute.xlu0 2
        %2066 = vperm.xlu0 %2065, %v1032
        %v2067 = vpop.permute.xlu0 %2066
        %2068 = vset.pattern.permute.xlu0 2
        %2069 = vperm.xlu0 %2068, %v1033
        %v2070 = vpop.permute.xlu0 %2069
        %2071 = vset.pattern.permute.xlu0 2
        %2072 = vperm.xlu0 %2071, %v1034
        %v2073 = vpop.permute.xlu0 %2072
        %2074 = vset.pattern.permute.xlu0 2
        %2075 = vperm.xlu0 %2074, %v1035
        %v2076 = vpop.permute.xlu0 %2075
        %2077 = vset.pattern.permute.xlu0 2
        %2078 = vperm.xlu0 %2077, %v1036
        %v2079 = vpop.permute.xlu0 %2078
        %2080 = vset.pattern.permute.xlu0 2
        %2081 = vperm.xlu0 %2080, %v1037
        %v2082 = vpop.permute.xlu0 %2081
        %2083 = vset.pattern.permute.xlu0 2
        %2084 = vperm.xlu0 %2083, %v1038
        %v2085 = vpop.permute.xlu0 %2084
        %2086 = vset.pattern.permute.xlu0 2
        %2087 = vperm.xlu0 %2086, %v1039
        %v2088 = vpop.permute.xlu0 %2087
        %vm2089 = vcmp.eq.s32.totalorder %v1121, %v2043
        %vm2090 = vcmp.eq.s32.totalorder %v1121, %v2046
        %vm2091 = vcmp.eq.s32.totalorder %v1121, %v2049
        %vm2092 = vcmp.eq.s32.totalorder %v1121, %v2052
        %vm2093 = vcmp.eq.s32.totalorder %v1121, %v2055
        %vm2094 = vcmp.eq.s32.totalorder %v1121, %v2058
        %vm2095 = vcmp.eq.s32.totalorder %v1121, %v2061
        %vm2096 = vcmp.eq.s32.totalorder %v1121, %v2064
        %vm2097 = vcmp.eq.s32.totalorder %v1121, %v2067
        %vm2098 = vcmp.eq.s32.totalorder %v1121, %v2070
        %vm2099 = vcmp.eq.s32.totalorder %v1121, %v2073
        %vm2100 = vcmp.eq.s32.totalorder %v1121, %v2076
        %vm2101 = vcmp.eq.s32.totalorder %v1121, %v2079
        %vm2102 = vcmp.eq.s32.totalorder %v1121, %v2082
        %vm2103 = vcmp.eq.s32.totalorder %v1121, %v2085
        %vm2104 = vcmp.eq.s32.totalorder %v1121, %v2088
        %2105 = vset.pattern.permute.xlu0 2
        %2106 = vperm.xlu0 %2105, %v1186
        %v2107 = vpop.permute.xlu0 %2106
        %2109 = vset.pattern.permute.xlu0 2
        %2110 = vperm.xlu0 %2109, %v1187
        %v2111 = vpop.permute.xlu0 %2110
        %2113 = vset.pattern.permute.xlu0 2
        %2114 = vperm.xlu0 %2113, %v1188
        %v2115 = vpop.permute.xlu0 %2114
        %2117 = vset.pattern.permute.xlu0 2
        %2118 = vperm.xlu0 %2117, %v1189
        %v2119 = vpop.permute.xlu0 %2118
        %2121 = vset.pattern.permute.xlu0 2
        %2122 = vperm.xlu0 %2121, %v1190
        %v2123 = vpop.permute.xlu0 %2122
        %2125 = vset.pattern.permute.xlu0 2
        %2126 = vperm.xlu0 %2125, %v1191
        %v2127 = vpop.permute.xlu0 %2126
        %2129 = vset.pattern.permute.xlu0 2
        %2130 = vperm.xlu0 %2129, %v1192
        %v2131 = vpop.permute.xlu0 %2130
        %2133 = vset.pattern.permute.xlu0 2
        %2134 = vperm.xlu0 %2133, %v1193
        %v2135 = vpop.permute.xlu0 %2134
        %2137 = vset.pattern.permute.xlu0 2
        %2138 = vperm.xlu0 %2137, %v1194
        %v2139 = vpop.permute.xlu0 %2138
        %2141 = vset.pattern.permute.xlu0 2
        %2142 = vperm.xlu0 %2141, %v1195
        %v2143 = vpop.permute.xlu0 %2142
        %2145 = vset.pattern.permute.xlu0 2
        %2146 = vperm.xlu0 %2145, %v1196
        %v2147 = vpop.permute.xlu0 %2146
        %2149 = vset.pattern.permute.xlu0 2
        %2150 = vperm.xlu0 %2149, %v1197
        %v2151 = vpop.permute.xlu0 %2150
        %2153 = vset.pattern.permute.xlu0 2
        %2154 = vperm.xlu0 %2153, %v1198
        %v2155 = vpop.permute.xlu0 %2154
        %2157 = vset.pattern.permute.xlu0 2
        %2158 = vperm.xlu0 %2157, %v1199
        %v2159 = vpop.permute.xlu0 %2158
        %2161 = vset.pattern.permute.xlu0 2
        %2162 = vperm.xlu0 %2161, %v1200
        %v2163 = vpop.permute.xlu0 %2162
        %2165 = vset.pattern.permute.xlu0 2
        %2166 = vperm.xlu0 %2165, %v1201
        %v2167 = vpop.permute.xlu0 %2166
        %v2169 = vsel %vm2089, %v2107, 0.0
        %v2170 = vsel %vm2090, %v2111, 0.0
        %v2171 = vsel %vm2091, %v2115, 0.0
        %v2172 = vsel %vm2092, %v2119, 0.0
        %v2173 = vsel %vm2093, %v2123, 0.0
        %v2174 = vsel %vm2094, %v2127, 0.0
        %v2175 = vsel %vm2095, %v2131, 0.0
        %v2176 = vsel %vm2096, %v2135, 0.0
        %v2177 = vsel %vm2097, %v2139, 0.0
        %v2178 = vsel %vm2098, %v2143, 0.0
        %v2179 = vsel %vm2099, %v2147, 0.0
        %v2180 = vsel %vm2100, %v2151, 0.0
        %v2181 = vsel %vm2101, %v2155, 0.0
        %v2182 = vsel %vm2102, %v2159, 0.0
        %v2183 = vsel %vm2103, %v2163, 0.0
        %v2184 = vsel %vm2104, %v2167, 0.0
        %2185 = vset.pattern.permute.xlu0 2
        %2186 = vperm.xlu0 %2185, %v1057
        %v2187 = vpop.permute.xlu0 %2186
        %2188 = vset.pattern.permute.xlu0 2
        %2189 = vperm.xlu0 %2188, %v1059
        %v2190 = vpop.permute.xlu0 %2189
        %2191 = vset.pattern.permute.xlu0 2
        %2192 = vperm.xlu0 %2191, %v1061
        %v2193 = vpop.permute.xlu0 %2192
        %2194 = vset.pattern.permute.xlu0 2
        %2195 = vperm.xlu0 %2194, %v1063
        %v2196 = vpop.permute.xlu0 %2195
        %2197 = vset.pattern.permute.xlu0 2
        %2198 = vperm.xlu0 %2197, %v1065
        %v2199 = vpop.permute.xlu0 %2198
        %2200 = vset.pattern.permute.xlu0 2
        %2201 = vperm.xlu0 %2200, %v1067
        %v2202 = vpop.permute.xlu0 %2201
        %2203 = vset.pattern.permute.xlu0 2
        %2204 = vperm.xlu0 %2203, %v1069
        %v2205 = vpop.permute.xlu0 %2204
        %2206 = vset.pattern.permute.xlu0 2
        %2207 = vperm.xlu0 %2206, %v1071
        %v2208 = vpop.permute.xlu0 %2207
        %2209 = vset.pattern.permute.xlu0 2
        %2210 = vperm.xlu0 %2209, %v1073
        %v2211 = vpop.permute.xlu0 %2210
        %2212 = vset.pattern.permute.xlu0 2
        %2213 = vperm.xlu0 %2212, %v1075
        %v2214 = vpop.permute.xlu0 %2213
        %2215 = vset.pattern.permute.xlu0 2
        %2216 = vperm.xlu0 %2215, %v1077
        %v2217 = vpop.permute.xlu0 %2216
        %2218 = vset.pattern.permute.xlu0 2
        %2219 = vperm.xlu0 %2218, %v1079
        %v2220 = vpop.permute.xlu0 %2219
        %2221 = vset.pattern.permute.xlu0 2
        %2222 = vperm.xlu0 %2221, %v1081
        %v2223 = vpop.permute.xlu0 %2222
        %2224 = vset.pattern.permute.xlu0 2
        %2225 = vperm.xlu0 %2224, %v1083
        %v2226 = vpop.permute.xlu0 %2225
        %2227 = vset.pattern.permute.xlu0 2
        %2228 = vperm.xlu0 %2227, %v1085
        %v2229 = vpop.permute.xlu0 %2228
        %2230 = vset.pattern.permute.xlu0 2
        %2231 = vperm.xlu0 %2230, %v1087
        %v2232 = vpop.permute.xlu0 %2231
        %vm2233 = vcmp.eq.s32.totalorder %v1121, %v2187
        %vm2234 = vcmp.eq.s32.totalorder %v1121, %v2190
        %vm2235 = vcmp.eq.s32.totalorder %v1121, %v2193
        %vm2236 = vcmp.eq.s32.totalorder %v1121, %v2196
        %vm2237 = vcmp.eq.s32.totalorder %v1121, %v2199
        %vm2238 = vcmp.eq.s32.totalorder %v1121, %v2202
        %vm2239 = vcmp.eq.s32.totalorder %v1121, %v2205
        %vm2240 = vcmp.eq.s32.totalorder %v1121, %v2208
        %vm2241 = vcmp.eq.s32.totalorder %v1121, %v2211
        %vm2242 = vcmp.eq.s32.totalorder %v1121, %v2214
        %vm2243 = vcmp.eq.s32.totalorder %v1121, %v2217
        %vm2244 = vcmp.eq.s32.totalorder %v1121, %v2220
        %vm2245 = vcmp.eq.s32.totalorder %v1121, %v2223
        %vm2246 = vcmp.eq.s32.totalorder %v1121, %v2226
        %vm2247 = vcmp.eq.s32.totalorder %v1121, %v2229
        %vm2248 = vcmp.eq.s32.totalorder %v1121, %v2232
        %2249 = vset.pattern.permute.xlu0 2
        %2250 = vperm.xlu0 %2249, %v1104
        %v2251 = vpop.permute.xlu0 %2250
        %2253 = vset.pattern.permute.xlu0 2
        %2254 = vperm.xlu0 %2253, %v1105
        %v2255 = vpop.permute.xlu0 %2254
        %2257 = vset.pattern.permute.xlu0 2
        %2258 = vperm.xlu0 %2257, %v1106
        %v2259 = vpop.permute.xlu0 %2258
        %2261 = vset.pattern.permute.xlu0 2
        %2262 = vperm.xlu0 %2261, %v1107
        %v2263 = vpop.permute.xlu0 %2262
        %2265 = vset.pattern.permute.xlu0 2
        %2266 = vperm.xlu0 %2265, %v1108
        %v2267 = vpop.permute.xlu0 %2266
        %2269 = vset.pattern.permute.xlu0 2
        %2270 = vperm.xlu0 %2269, %v1109
        %v2271 = vpop.permute.xlu0 %2270
        %2273 = vset.pattern.permute.xlu0 2
        %2274 = vperm.xlu0 %2273, %v1110
        %v2275 = vpop.permute.xlu0 %2274
        %2277 = vset.pattern.permute.xlu0 2
        %2278 = vperm.xlu0 %2277, %v1111
        %v2279 = vpop.permute.xlu0 %2278
        %2281 = vset.pattern.permute.xlu0 2
        %2282 = vperm.xlu0 %2281, %v1112
        %v2283 = vpop.permute.xlu0 %2282
        %2285 = vset.pattern.permute.xlu0 2
        %2286 = vperm.xlu0 %2285, %v1113
        %v2287 = vpop.permute.xlu0 %2286
        %2289 = vset.pattern.permute.xlu0 2
        %2290 = vperm.xlu0 %2289, %v1114
        %v2291 = vpop.permute.xlu0 %2290
        %2293 = vset.pattern.permute.xlu0 2
        %2294 = vperm.xlu0 %2293, %v1115
        %v2295 = vpop.permute.xlu0 %2294
        %2297 = vset.pattern.permute.xlu0 2
        %2298 = vperm.xlu0 %2297, %v1116
        %v2299 = vpop.permute.xlu0 %2298
        %2301 = vset.pattern.permute.xlu0 2
        %2302 = vperm.xlu0 %2301, %v1117
        %v2303 = vpop.permute.xlu0 %2302
        %2305 = vset.pattern.permute.xlu0 2
        %2306 = vperm.xlu0 %2305, %v1118
        %v2307 = vpop.permute.xlu0 %2306
        %2309 = vset.pattern.permute.xlu0 2
        %2310 = vperm.xlu0 %2309, %v1119
        %v2311 = vpop.permute.xlu0 %2310
        %v2313 = vsel %vm2233, %v2251, 0.0
        %v2314 = vsel %vm2234, %v2255, 0.0
        %v2315 = vsel %vm2235, %v2259, 0.0
        %v2316 = vsel %vm2236, %v2263, 0.0
        %v2317 = vsel %vm2237, %v2267, 0.0
        %v2318 = vsel %vm2238, %v2271, 0.0
        %v2319 = vsel %vm2239, %v2275, 0.0
        %v2320 = vsel %vm2240, %v2279, 0.0
        %v2321 = vsel %vm2241, %v2283, 0.0
        %v2322 = vsel %vm2242, %v2287, 0.0
        %v2323 = vsel %vm2243, %v2291, 0.0
        %v2324 = vsel %vm2244, %v2295, 0.0
        %v2325 = vsel %vm2245, %v2299, 0.0
        %v2326 = vsel %vm2246, %v2303, 0.0
        %v2327 = vsel %vm2247, %v2307, 0.0
        %v2328 = vsel %vm2248, %v2311, 0.0
        %v2329 = vadd.f32 %v2169, %v2313
        %v2330 = vadd.f32 %v2170, %v2314
        %v2331 = vadd.f32 %v2171, %v2315
        %v2332 = vadd.f32 %v2172, %v2316
        %v2333 = vadd.f32 %v2173, %v2317
        %v2334 = vadd.f32 %v2174, %v2318
        %v2335 = vadd.f32 %v2175, %v2319
        %v2336 = vadd.f32 %v2176, %v2320
        %v2337 = vadd.f32 %v2177, %v2321
        %v2338 = vadd.f32 %v2178, %v2322
        %v2339 = vadd.f32 %v2179, %v2323
        %v2340 = vadd.f32 %v2180, %v2324
        %v2341 = vadd.f32 %v2181, %v2325
        %v2342 = vadd.f32 %v2182, %v2326
        %v2343 = vadd.f32 %v2183, %v2327
        %v2344 = vadd.f32 %v2184, %v2328
        %v2345 = vld [vmem:[#allocation2 + $0x20] sm:$0xff]
        %v2346 = vld [vmem:[#allocation2 + $0x28] sm:$0xff]
        %v2348 = vsel %vm1476, %v2329, 0
        %v2351 = vsel %vm1476, %v2330, 0
        %v2354 = vsel %vm1476, %v2331, 0
        %v2357 = vsel %vm1476, %v2332, 0
        %v2360 = vsel %vm1476, %v2333, 0
        %v2363 = vsel %vm1476, %v2334, 0
        %v2366 = vsel %vm1476, %v2335, 0
        %v2369 = vsel %vm1476, %v2336, 0
        %v2372 = vsel %vm1476, %v2337, 0
        %v2375 = vsel %vm1476, %v2338, 0
        %v2378 = vsel %vm1476, %v2339, 0
        %v2381 = vsel %vm1476, %v2340, 0
        %v2384 = vsel %vm1476, %v2341, 0
        %v2387 = vsel %vm1476, %v2342, 0
        %v2390 = vsel %vm1476, %v2343, 0
        %v2393 = vsel %vm1476, %v2344, 0
        %2395 = vmatpush.msra.mxu0 0.0
        %2396 = vmatpush.msra.mxu0 0.0
        %2397 = vmatpush.msra.mxu0 0.0
        %2398 = vmatpush.msra.mxu0 0.0
        %2399 = vmatpush.msra.mxu0 0.0
        %2400 = vmatpush.msra.mxu0 0.0
        %2401 = vmatpush.msra.mxu0 0.0
        %2402 = vmatpush.msra.mxu0 0.0
        %2403 = vmatpush.msra.mxu0 0.0
        %2404 = vmatpush.msra.mxu0 0.0
        %2405 = vmatpush.msra.mxu0 0.0
        %2406 = vmatpush.msra.mxu0 0.0
        %2407 = vmatpush.msra.mxu0 0.0
        %2408 = vmatpush.msra.mxu0 0.0
        %2409 = vmatpush.msra.mxu0 %v2346
        %2410 = vmatpush.msra.mxu0 %v2345
        %2411 = vmatmul.f32.gmra.mxu0 %v2348
        %v2412 = vpop.f32.mrf.mxu0
        %v2413 = vadd.f32 0.0, %v2412
        %2414 = vmatmul.f32.gmra.mxu0 %v2351
        %v2415 = vpop.f32.mrf.mxu0
        %v2416 = vadd.f32 0.0, %v2415
        %2417 = vmatmul.f32.gmra.mxu0 %v2354
        %v2418 = vpop.f32.mrf.mxu0
        %v2419 = vadd.f32 0.0, %v2418
        %2420 = vmatmul.f32.gmra.mxu0 %v2357
        %v2421 = vpop.f32.mrf.mxu0
        %v2422 = vadd.f32 0.0, %v2421
        %2423 = vmatmul.f32.gmra.mxu0 %v2360
        %v2424 = vpop.f32.mrf.mxu0
        %v2425 = vadd.f32 0.0, %v2424
        %2426 = vmatmul.f32.gmra.mxu0 %v2363
        %v2427 = vpop.f32.mrf.mxu0
        %v2428 = vadd.f32 0.0, %v2427
        %2429 = vmatmul.f32.gmra.mxu0 %v2366
        %v2430 = vpop.f32.mrf.mxu0
        %v2431 = vadd.f32 0.0, %v2430
        %2432 = vmatmul.f32.gmra.mxu0 %v2369
        %v2433 = vpop.f32.mrf.mxu0
        %v2434 = vadd.f32 0.0, %v2433
        %2435 = vmatmul.f32.gmra.mxu0 %v2372
        %v2436 = vpop.f32.mrf.mxu0
        %v2437 = vadd.f32 0.0, %v2436
        %2438 = vmatmul.f32.gmra.mxu0 %v2375
        %v2439 = vpop.f32.mrf.mxu0
        %v2440 = vadd.f32 0.0, %v2439
        %2441 = vmatmul.f32.gmra.mxu0 %v2378
        %v2442 = vpop.f32.mrf.mxu0
        %v2443 = vadd.f32 0.0, %v2442
        %2444 = vmatmul.f32.gmra.mxu0 %v2381
        %v2445 = vpop.f32.mrf.mxu0
        %v2446 = vadd.f32 0.0, %v2445
        %2447 = vmatmul.f32.gmra.mxu0 %v2384
        %v2448 = vpop.f32.mrf.mxu0
        %v2449 = vadd.f32 0.0, %v2448
        %2450 = vmatmul.f32.gmra.mxu0 %v2387
        %v2451 = vpop.f32.mrf.mxu0
        %v2452 = vadd.f32 0.0, %v2451
        %2453 = vmatmul.f32.gmra.mxu0 %v2390
        %v2454 = vpop.f32.mrf.mxu0
        %v2455 = vadd.f32 0.0, %v2454
        %2456 = vmatmul.f32.gmra.mxu0 %v2393
        %v2457 = vpop.f32.mrf.mxu0
        %v2458 = vadd.f32 0.0, %v2457
        %2459 = vdwg.mxu0
        %2460 = vst [vmem:[%s220 + $0x10] sm:$0xff] %v2413
        %2461 = vst [vmem:[%s220 + $0x28] sm:$0xff] %v2416
        %2462 = vst [vmem:[%s220 + $0x40] sm:$0xff] %v2419
        %2463 = vst [vmem:[%s220 + $0x58] sm:$0xff] %v2422
        %2464 = vst [vmem:[%s220 + $0x70] sm:$0xff] %v2425
        %2465 = vst [vmem:[%s220 + $0x88] sm:$0xff] %v2428
        %2466 = vst [vmem:[%s220 + $0xa0] sm:$0xff] %v2431
        %2467 = vst [vmem:[%s220 + $0xb8] sm:$0xff] %v2434
        %2468 = vst [vmem:[%s220 + $0xd0] sm:$0xff] %v2437
        %2469 = vst [vmem:[%s220 + $0xe8] sm:$0xff] %v2440
        %2470 = vst [vmem:[%s220 + $0x100] sm:$0xff] %v2443
        %2471 = vst [vmem:[%s220 + $0x118] sm:$0xff] %v2446
        %2472 = vst [vmem:[%s220 + $0x130] sm:$0xff] %v2449
        %2473 = vst [vmem:[%s220 + $0x148] sm:$0xff] %v2452
        %2474 = vst [vmem:[%s220 + $0x160] sm:$0xff] %v2455
        %2475 = vst [vmem:[%s220 + $0x178] sm:$0xff] %v2458
        %s2476 = sand.u32 %s115, 1
        %s2477 = scalar_lea.sflag [#allocation5], %s2476
        %s2478 = sand.u32 %s115, 1
        %s2479 = smul.addr %s2478, 384
        %s2480 = scalar_lea.vmem [#allocation6], %s2479
        // Predicated region
        $region41: #{tpu_custom_call.1} parent=31 // pred_check
          %p2481 = pneg %p125
        $region42: #{tpu_custom_call.1} parent=31 // pred_check_branch
          %2483 = sbr.rel (%p2481) target = $region44
        $region43: #{tpu_custom_call.1} parent=31 // pred_region
          %s2484 = smul.u32 16, %s23
          %2486 = vsyncadd %s2477, 0
          %s2487 = smul.addr %s2484, 3
          %s2488 = smul.addr %s22, 48
          %s2489 = sadd.s32 %s2487, %s2488
          %s2490 = smul.addr %s2489, 8
          %s2491 = scalar_lea.hbm %s3, %s2490
          %s2492 = sshll.u32 %s2480, 4
          %s2493 = int_to_ptr.vmem [resolvable:$true] %s2492
          %s2494 = sshll.u32 %s2491, 4
          %s2495 = int_to_ptr.hbm [resolvable:$true] %s2494
          %2500 = dma.vmem_to_hbm [thread:$0]  %s2493, 6144, %s2495, %s2477, 384, 384, 24
        $region44: #{tpu_custom_call.1} parent=31 // pred_fallthru
          _
      $region32: #{tpu_custom_call.1} parent=5 // pred_fallthru
        _
      %p2501 = scmp.le.s32.totalorder 2, %s13
      // Predicated region
      $region45: #{tpu_custom_call.1} parent=5 // pred_check
        %p2502 = pneg %p2501
      $region46: #{tpu_custom_call.1} parent=5 // pred_check_branch
        %2504 = sbr.rel (%p2502) target = $region48
      $region47: #{tpu_custom_call.1} parent=5 // pred_region
        %s2505 = ssub.s32 %s13, 2
        // Predicated region
        $region49: #{tpu_custom_call.1} parent=47 // pred_check
          %p2506 = pneg %p131
        $region50: #{tpu_custom_call.1} parent=47 // pred_check_branch
          %2508 = sbr.rel (%p2506) target = $region52
        $region51: #{tpu_custom_call.1} parent=47 // pred_region
          %s2509 = sand.u32 %s116, 1
          %s2510 = scalar_lea.sflag [#allocation5], %s2509
          %s2511 = sand.u32 %s116, 1
          %s2512 = smul.addr %s2511, 384
          %s2513 = scalar_lea.vmem [#allocation6], %s2512
          %2515 = dma.done %s2510, 6144
        $region52: #{tpu_custom_call.1} parent=47 // pred_fallthru
          _
      $region48: #{tpu_custom_call.1} parent=5 // pred_fallthru
        _
    $region6: #{tpu_custom_call.1} parent=1 // loop_footer
      %s17 = sadd.s32 1, %s13
    $region7: #{tpu_custom_call.1} parent=1 // loop_footer_branch
      %12 = sbr.rel target = $region3
    $region8: #{tpu_custom_call.1} parent=1 // loop_exit
      _
    %2516 = vsyncpa [#allocation4], 1
    %s2517 = scalar_lea.sflag [#allocation4], 1
    %2518 = vsyncpa %s2517, 1
    %2519 = vsyncpa [#allocation5], 1
    %s2520 = scalar_lea.sflag [#allocation5], 1
    %2521 = vsyncpa %s2520, 1

</llo_original>
